<compile_context>
chip_gen: v5e
topology: v5e:2x2
jax: 0.10.0
libtpu: 0.0.40
codegen_flags: <defaults>
</compile_context>

<pallas_src>
import functools
import math

import jax
import jax.numpy as jnp
from jax.experimental import pallas as pl
from jax.experimental.pallas import tpu as pltpu

BN_EPS = 1e-5


def _round_up(x, m):
    return ((x + m - 1) // m) * m


# ----------------------------------------------------------------------------
# Fused multi-layer pointwise-MLP Pallas kernel
#   layer 0:  y = recv @ w_a + feat1 @ w_b   (fused concat via split-K)
#   each layer: bf16 matmul -> f32 (bias + ReLU) -> bf16 carry
# ----------------------------------------------------------------------------
def _fused_mlp_kernel(recv_ref, feat_ref, *refs, num_layers):
    out_ref = refs[-1]

    y = jnp.dot(recv_ref[...], refs[0][...], preferred_element_type=jnp.float32)
    y = y + jnp.dot(feat_ref[...], refs[1][...], preferred_element_type=jnp.float32)
    h = jnp.maximum(y + refs[2][...], 0.0)            # f32 epilogue (BN-bias + ReLU)
    if num_layers > 1:
        h = h.astype(jnp.bfloat16)                     # carry bf16 between layers

    for l in range(1, num_layers):
        w = refs[1 + 2 * l][...]                       # (u_{l-1}_p, u_l_p) bf16, BN scale folded
        bias = refs[2 + 2 * l][...]                    # (1, u_l_p) f32
        y = jnp.dot(h, w, preferred_element_type=jnp.float32)
        h = jnp.maximum(y + bias, 0.0)
        if l < num_layers - 1:
            h = h.astype(jnp.bfloat16)

    out_ref[...] = h                                   # f32 (module output dtype)


def fused_pointwise_mlp(receive, features_1, layers, mlp_units, tile_m=512):
    """receive: (b, n1, c2), features_1: (b, n1, c1); returns (b, n1, mlp_units[-1])."""
    b, n1, c2 = receive.shape
    c1 = features_1.shape[-1]
    n_rows = b * n1
    cout = mlp_units[-1]                               # static python int
    cout_p = layers[-1]["bias"].shape[1]
    num_layers = len(layers)

    recv2 = receive.reshape(n_rows, c2).astype(jnp.bfloat16)
    feat2 = features_1.reshape(n_rows, c1).astype(jnp.bfloat16)

    # Row tile: big enough to amortize per-step overhead, small enough to give
    # several grid steps (pipeline overlap + both v7x TensorCores).
    tile = tile_m
    while tile > 256 and pl.cdiv(n_rows, tile) < 4:
        tile //= 2
    if n_rows <= tile:
        tile = n_rows                                  # block == full dim (always legal)
    grid = (pl.cdiv(n_rows, tile),)

    in_specs = [
        pl.BlockSpec((tile, c2), lambda i: (i, 0)),
        pl.BlockSpec((tile, c1), lambda i: (i, 0)),
        pl.BlockSpec(layers[0]["w_a"].shape, lambda i: (0, 0)),
        pl.BlockSpec(layers[0]["w_b"].shape, lambda i: (0, 0)),
        pl.BlockSpec(layers[0]["bias"].shape, lambda i: (0, 0)),
    ]
    operands = [recv2, feat2, layers[0]["w_a"], layers[0]["w_b"], layers[0]["bias"]]
    for layer in layers[1:]:
        in_specs.append(pl.BlockSpec(layer["w"].shape, lambda i: (0, 0)))
        in_specs.append(pl.BlockSpec(layer["bias"].shape, lambda i: (0, 0)))
        operands += [layer["w"], layer["bias"]]

    # Cost estimate (lets XLA overlap the 3-NN prologue with this kernel).
    weight_bytes = sum(int(op.size) * op.dtype.itemsize for op in operands[2:])
    flops = 2 * n_rows * (c1 + c2) * layers[0]["bias"].shape[1]
    for layer in layers[1:]:
        flops += 2 * n_rows * layer["w"].shape[0] * layer["w"].shape[1]
    bytes_accessed = (int(recv2.size) * 2 + int(feat2.size) * 2
                      + weight_bytes + n_rows * cout_p * 4)

    # VMEM budget from actual buffer sizes (never hardcode 64 MiB: that is the
    # whole physical VMEM of a v7x TensorCore).
    max_up = max(l["bias"].shape[1] for l in layers)
    est = (2 * weight_bytes                       # weights/biases, double-buffered
           + 2 * tile * (c1 + c2) * 2             # bf16 activation inputs, 2 buffers
           + 2 * tile * cout_p * 4                # f32 output, 2 buffers
           + 4 * tile * max_up * 4)               # in-flight intermediates headroom
    vmem_limit = int(min(32 * 1024 * 1024, max(8 * 1024 * 1024, 2 * est)))

    out = pl.pallas_call(
        functools.partial(_fused_mlp_kernel, num_layers=num_layers),
        out_shape=jax.ShapeDtypeStruct((n_rows, cout_p), jnp.float32),
        grid=grid,
        in_specs=in_specs,
        out_specs=pl.BlockSpec((tile, cout_p), lambda i: (i, 0)),
        compiler_params=pltpu.CompilerParams(
            dimension_semantics=("parallel",),
            vmem_limit_bytes=vmem_limit,
        ),
        cost_estimate=pl.CostEstimate(flops=int(flops), transcendentals=0,
                                      bytes_accessed=int(bytes_accessed)),
    )(*operands)

    if cout_p != cout:
        out = out[:, :cout]                        # static slice (cout is a python int)
    return out.reshape(b, n1, cout)


# ----------------------------------------------------------------------------
# Geometry glue (plain JAX): 3-NN inverse-distance interpolation
# ----------------------------------------------------------------------------
def square_distance(a, b):
    return jnp.sum((a[:, :, None, :] - b[:, None, :, :]) ** 2, axis=-1)


def three_nn_interpolate(points_1, points_2, features_2):
    # TODO(synk): knn_query_cuda2 source not provided; assumed squared-distance
    # 3-NN with inverse-distance weights (classic PointNet++ FP semantics).
    d2 = square_distance(points_1, points_2)                   # (b, n1, n2)
    neg_d, idx = jax.lax.top_k(-d2, 3)
    dists = -neg_d
    recip = 1.0 / (dists + 1e-8)
    weights = recip / jnp.sum(recip, axis=-1, keepdims=True)
    nb = jnp.take_along_axis(features_2[:, None, :, :], idx[..., None], axis=2)
    return jnp.sum(weights[..., None] * nb, axis=2)            # (b, n1, c2)


# ----------------------------------------------------------------------------
# PointFeaturePropagationLayer forward (channels-last layout)
# ----------------------------------------------------------------------------
def fp_forward(params, points_1, features_1, points_2, features_2, *, mlp_units):
    b, n1, _ = points_1.shape
    n2 = points_2.shape[1]
    if n2 == 1:
        receive = jnp.broadcast_to(features_2, (b, n1, features_2.shape[-1]))
    else:
        receive = three_nn_interpolate(points_1, points_2, features_2)
    return fused_pointwise_mlp(receive, features_1, params["mlp"], mlp_units)


# ----------------------------------------------------------------------------
# Deterministic init: eval-mode BN folded into weights, lane-padded, bf16
# ----------------------------------------------------------------------------
def init_fp_params(key, c1, c2, mlp_units):
    """c2 = interpolated-feature width (concat first), c1 = skip-feature width."""
    kernel_layers = []
    ref_layers = []
    cin = c2 + c1
    for li, u in enumerate(mlp_units):
        key, sub = jax.random.split(key)
        bound = 1.0 / math.sqrt(cin)                 # PyTorch Conv1d default init
        w = jax.random.uniform(sub, (cin, u), jnp.float32, -bound, bound)
        # eval-mode BatchNorm with default stats: gamma=1, beta=0, mean=0, var=1
        scale = jnp.full((u,), 1.0 / math.sqrt(1.0 + BN_EPS), jnp.float32)
        bias = jnp.zeros((u,), jnp.float32)
        ref_layers.append(dict(w=w, scale=scale, bias=bias))

        u_p = _round_up(u, 128)
        w_fold = w * scale[None, :]                  # fold BN scale into weights
        bias_p = jnp.pad(bias, (0, u_p - u)).reshape(1, u_p).astype(jnp.float32)
        if li == 0:
            w_a = jnp.pad(w_fold[:c2], ((0, 0), (0, u_p - u))).astype(jnp.bfloat16)
            w_b = jnp.pad(w_fold[c2:], ((0, 0), (0, u_p - u))).astype(jnp.bfloat16)
            kernel_layers.append(dict(w_a=w_a, w_b=w_b, bias=bias_p))
        else:
            cin_p = _round_up(cin, 128)
            w_pad = jnp.pad(w_fold, ((0, cin_p - cin), (0, u_p - u))).astype(jnp.bfloat16)
            kernel_layers.append(dict(w=w_pad, bias=bias_p))
        cin = u
    return dict(mlp=kernel_layers), ref_layers


# ----------------------------------------------------------------------------
# Demo / self-test
# ----------------------------------------------------------------------------
if __name__ == "__main__":
    key = jax.random.PRNGKey(0)
    kp, k1, k2, k3, k4 = jax.random.split(key, 5)

    b, n1, n2 = 2, 512, 128
    c1, c2 = 64, 128
    mlp_units = (256, 128)

    params, ref_layers = init_fp_params(kp, c1, c2, mlp_units)

    points_1 = jax.random.uniform(k1, (b, n1, 3), jnp.float32)
    features_1 = jax.random.normal(k2, (b, n1, c1), jnp.float32)
    points_2 = jax.random.uniform(k3, (b, n2, 3), jnp.float32)
    features_2 = jax.random.normal(k4, (b, n2, c2), jnp.float32)

    fwd = jax.jit(functools.partial(fp_forward, mlp_units=mlp_units))
    out = fwd(params, points_1, features_1, points_2, features_2)
    jax.block_until_ready(out)

    assert out.shape == (b, n1, mlp_units[-1]), out.shape
    assert bool(jnp.all(jnp.isfinite(out)))

    # Pure-JAX f32 reference of the whole forward (bf16-matmul tolerance).
    h_ref = jnp.concatenate(
        [three_nn_interpolate(points_1, points_2, features_2), features_1], axis=-1)
    for layer in ref_layers:
        h_ref = jnp.maximum(h_ref @ layer["w"] * layer["scale"] + layer["bias"], 0.0)

    max_err = float(jnp.max(jnp.abs(out - h_ref)))
    ref_max = float(jnp.max(jnp.abs(h_ref)))
    assert max_err <= 0.05 * max(ref_max, 1.0), (max_err, ref_max)

    print("KERNEL_OK")
</pallas_src>

<mosaic_0001>
module attributes {stable_mosaic.version = 11 : i64} {
  func.func @_fused_mlp_kernel(%arg0: i32, %arg1: memref<256x128xbf16, #tpu.memory_space<vmem>>, %arg2: memref<256x64xbf16, #tpu.memory_space<vmem>>, %arg3: memref<128x256xbf16, #tpu.memory_space<vmem>>, %arg4: memref<64x256xbf16, #tpu.memory_space<vmem>>, %arg5: memref<1x256xf32, #tpu.memory_space<vmem>>, %arg6: memref<256x128xbf16, #tpu.memory_space<vmem>>, %arg7: memref<1x128xf32, #tpu.memory_space<vmem>>, %arg8: memref<256x128xf32, #tpu.memory_space<vmem>>) attributes {dimension_semantics = [#tpu.dimension_semantics<parallel>], iteration_bounds = array<i64: 4>, scalar_prefetch = 0 : i64, scratch_operands = 0 : i64, tpu.core_type = #tpu.core_type<tc>, window_params = [{transform_indices = @transform_0, window_bounds = array<i64: 256, 128>}, {transform_indices = @transform_1, window_bounds = array<i64: 256, 64>}, {pipeline_mode = #tpu.pipeline_mode<synchronous>, transform_indices = @transform_2, window_bounds = array<i64: 128, 256>}, {pipeline_mode = #tpu.pipeline_mode<synchronous>, transform_indices = @transform_3, window_bounds = array<i64: 64, 256>}, {pipeline_mode = #tpu.pipeline_mode<synchronous>, transform_indices = @transform_4, window_bounds = array<i64: 1, 256>}, {pipeline_mode = #tpu.pipeline_mode<synchronous>, transform_indices = @transform_5, window_bounds = array<i64: 256, 128>}, {pipeline_mode = #tpu.pipeline_mode<synchronous>, transform_indices = @transform_6, window_bounds = array<i64: 1, 128>}, {transform_indices = @transform_7, window_bounds = array<i64: 256, 128>}]} {
    %c0 = arith.constant 0 : index
    %c0_0 = arith.constant 0 : index
    %0 = vector.load %arg1[%c0, %c0_0] : memref<256x128xbf16, #tpu.memory_space<vmem>>, vector<256x128xbf16>
    %c0_1 = arith.constant 0 : index
    %c0_2 = arith.constant 0 : index
    %1 = vector.load %arg3[%c0_1, %c0_2] : memref<128x256xbf16, #tpu.memory_space<vmem>>, vector<128x256xbf16>
    %cst = arith.constant dense<0.000000e+00> : vector<256x256xf32>
    %2 = tpu.matmul %0, %1, %cst {dimension_numbers = #tpu.dot_dimension_numbers<[1], [0], [0], [1], [0, 0, 1, 1], [], []>} : vector<256x128xbf16>, vector<128x256xbf16>, vector<256x256xf32> -> vector<256x256xf32>
    %c0_3 = arith.constant 0 : index
    %c0_4 = arith.constant 0 : index
    %3 = vector.load %arg2[%c0_3, %c0_4] : memref<256x64xbf16, #tpu.memory_space<vmem>>, vector<256x64xbf16>
    %c0_5 = arith.constant 0 : index
    %c0_6 = arith.constant 0 : index
    %4 = vector.load %arg4[%c0_5, %c0_6] : memref<64x256xbf16, #tpu.memory_space<vmem>>, vector<64x256xbf16>
    %cst_7 = arith.constant dense<0.000000e+00> : vector<256x256xf32>
    %5 = tpu.matmul %3, %4, %cst_7 {dimension_numbers = #tpu.dot_dimension_numbers<[1], [0], [0], [1], [0, 0, 1, 1], [], []>} : vector<256x64xbf16>, vector<64x256xbf16>, vector<256x256xf32> -> vector<256x256xf32>
    %6 = arith.addf %2, %5 : vector<256x256xf32>
    %c0_8 = arith.constant 0 : index
    %c0_9 = arith.constant 0 : index
    %7 = vector.load %arg5[%c0_8, %c0_9] : memref<1x256xf32, #tpu.memory_space<vmem>>, vector<1x256xf32>
    %8 = vector.broadcast %7 : vector<1x256xf32> to vector<256x256xf32>
    %9 = arith.addf %6, %8 : vector<256x256xf32>
    %cst_10 = arith.constant 0.000000e+00 : f32
    %10 = vector.broadcast %cst_10 : f32 to vector<256x256xf32>
    %11 = arith.maximumf %9, %10 : vector<256x256xf32>
    %12 = arith.truncf %11 : vector<256x256xf32> to vector<256x256xbf16>
    %c0_11 = arith.constant 0 : index
    %c0_12 = arith.constant 0 : index
    %13 = vector.load %arg6[%c0_11, %c0_12] : memref<256x128xbf16, #tpu.memory_space<vmem>>, vector<256x128xbf16>
    %c0_13 = arith.constant 0 : index
    %c0_14 = arith.constant 0 : index
    %14 = vector.load %arg7[%c0_13, %c0_14] : memref<1x128xf32, #tpu.memory_space<vmem>>, vector<1x128xf32>
    %cst_15 = arith.constant dense<0.000000e+00> : vector<256x128xf32>
    %15 = tpu.matmul %12, %13, %cst_15 {dimension_numbers = #tpu.dot_dimension_numbers<[1], [0], [0], [1], [0, 0, 1, 1], [], []>} : vector<256x256xbf16>, vector<256x128xbf16>, vector<256x128xf32> -> vector<256x128xf32>
    %16 = vector.broadcast %14 : vector<1x128xf32> to vector<256x128xf32>
    %17 = arith.addf %15, %16 : vector<256x128xf32>
    %cst_16 = arith.constant 0.000000e+00 : f32
    %18 = vector.broadcast %cst_16 : f32 to vector<256x128xf32>
    %19 = arith.maximumf %17, %18 : vector<256x128xf32>
    %c0_17 = arith.constant 0 : index
    %c0_18 = arith.constant 0 : index
    %20 = vector.load %arg8[%c0_17, %c0_18] : memref<256x128xf32, #tpu.memory_space<vmem>>, vector<256x128xf32>
    tpu.vector_store %arg8[%c0_17, %c0_18], %19 {strides = array<i32>} : memref<256x128xf32, #tpu.memory_space<vmem>>, vector<256x128xf32>,
    return
  }
  func.func @transform_0(%arg0: i32) -> (i32, i32) {
    %c0_i32 = arith.constant 0 : i32
    %c0_i32_0 = arith.constant 0 : i32
    return %arg0, %c0_i32 : i32, i32
  }
  func.func @transform_1(%arg0: i32) -> (i32, i32) {
    %c0_i32 = arith.constant 0 : i32
    %c0_i32_0 = arith.constant 0 : i32
    return %arg0, %c0_i32 : i32, i32
  }
  func.func @transform_2(%arg0: i32) -> (i32, i32) {
    %c0_i32 = arith.constant 0 : i32
    %c0_i32_0 = arith.constant 0 : i32
    %c0_i32_1 = arith.constant 0 : i32
    return %c0_i32, %c0_i32_0 : i32, i32
  }
  func.func @transform_3(%arg0: i32) -> (i32, i32) {
    %c0_i32 = arith.constant 0 : i32
    %c0_i32_0 = arith.constant 0 : i32
    %c0_i32_1 = arith.constant 0 : i32
    return %c0_i32, %c0_i32_0 : i32, i32
  }
  func.func @transform_4(%arg0: i32) -> (i32, i32) {
    %c0_i32 = arith.constant 0 : i32
    %c0_i32_0 = arith.constant 0 : i32
    %c0_i32_1 = arith.constant 0 : i32
    return %c0_i32, %c0_i32_0 : i32, i32
  }
  func.func @transform_5(%arg0: i32) -> (i32, i32) {
    %c0_i32 = arith.constant 0 : i32
    %c0_i32_0 = arith.constant 0 : i32
    %c0_i32_1 = arith.constant 0 : i32
    return %c0_i32, %c0_i32_0 : i32, i32
  }
  func.func @transform_6(%arg0: i32) -> (i32, i32) {
    %c0_i32 = arith.constant 0 : i32
    %c0_i32_0 = arith.constant 0 : i32
    %c0_i32_1 = arith.constant 0 : i32
    return %c0_i32, %c0_i32_0 : i32, i32
  }
  func.func @transform_7(%arg0: i32) -> (i32, i32) {
    %c0_i32 = arith.constant 0 : i32
    %c0_i32_0 = arith.constant 0 : i32
    return %arg0, %c0_i32 : i32, i32
  }
}

</mosaic_0001>

<llo_original>
// kernel: neg.2
$region0: #{neg.2}
  #allocation0 [shape = 's32[1]{0}', space=sflag, size = 0x4, scoped, tag = 'scoped memory for neg.2']
  %s0 = inlined_call_operand.vmem [shape: f32[2,512,128], index: 0, kind: input, shape index: {}]
  %s1 = inlined_call_operand.vmem [shape: f32[2,512,128], index: 1, kind: output, shape index: {}]
  %v2 = vld [vmem:[%s0] sm:$0xff]
  %3 = xla_tuple %v2
  %4 = xla_tuple %3
  %v5 = vxor.u32 %v2, 2147483648
  %6 = xla_tuple %v5
  %7 = vst [vmem:[%s1] sm:$0xff] %v5
  %s8 = scalar_lea.vmem %s0, 512
  %v9 = vld [vmem:[%s8] sm:$0xff]
  %10 = xla_tuple %v9
  %11 = xla_tuple %10
  %v12 = vxor.u32 %v9, 2147483648
  %13 = xla_tuple %v12
  %s14 = scalar_lea.vmem %s1, 512
  %15 = vst [vmem:[%s14] sm:$0xff] %v12
  %s16 = scalar_lea.vmem %s0, 8
  %v17 = vld [vmem:[%s16] sm:$0xff]
  %18 = xla_tuple %v17
  %19 = xla_tuple %18
  %v20 = vxor.u32 %v17, 2147483648
  %21 = xla_tuple %v20
  %s22 = scalar_lea.vmem %s1, 8
  %23 = vst [vmem:[%s22] sm:$0xff] %v20
  %s24 = scalar_lea.vmem %s0, 520
  %v25 = vld [vmem:[%s24] sm:$0xff]
  %26 = xla_tuple %v25
  %27 = xla_tuple %26
  %v28 = vxor.u32 %v25, 2147483648
  %29 = xla_tuple %v28
  %s30 = scalar_lea.vmem %s1, 520
  %31 = vst [vmem:[%s30] sm:$0xff] %v28
  %s32 = scalar_lea.vmem %s0, 16
  %v33 = vld [vmem:[%s32] sm:$0xff]
  %34 = xla_tuple %v33
  %35 = xla_tuple %34
  %v36 = vxor.u32 %v33, 2147483648
  %37 = xla_tuple %v36
  %s38 = scalar_lea.vmem %s1, 16
  %39 = vst [vmem:[%s38] sm:$0xff] %v36
  %s40 = scalar_lea.vmem %s0, 528
  %v41 = vld [vmem:[%s40] sm:$0xff]
  %42 = xla_tuple %v41
  %43 = xla_tuple %42
  %v44 = vxor.u32 %v41, 2147483648
  %45 = xla_tuple %v44
  %s46 = scalar_lea.vmem %s1, 528
  %47 = vst [vmem:[%s46] sm:$0xff] %v44
  %s48 = scalar_lea.vmem %s0, 24
  %v49 = vld [vmem:[%s48] sm:$0xff]
  %50 = xla_tuple %v49
  %51 = xla_tuple %50
  %v52 = vxor.u32 %v49, 2147483648
  %53 = xla_tuple %v52
  %s54 = scalar_lea.vmem %s1, 24
  %55 = vst [vmem:[%s54] sm:$0xff] %v52
  %s56 = scalar_lea.vmem %s0, 536
  %v57 = vld [vmem:[%s56] sm:$0xff]
  %58 = xla_tuple %v57
  %59 = xla_tuple %58
  %v60 = vxor.u32 %v57, 2147483648
  %61 = xla_tuple %v60
  %s62 = scalar_lea.vmem %s1, 536
  %63 = vst [vmem:[%s62] sm:$0xff] %v60
  %s64 = scalar_lea.vmem %s0, 32
  %v65 = vld [vmem:[%s64] sm:$0xff]
  %66 = xla_tuple %v65
  %67 = xla_tuple %66
  %v68 = vxor.u32 %v65, 2147483648
  %69 = xla_tuple %v68
  %s70 = scalar_lea.vmem %s1, 32
  %71 = vst [vmem:[%s70] sm:$0xff] %v68
  %s72 = scalar_lea.vmem %s0, 544
  %v73 = vld [vmem:[%s72] sm:$0xff]
  %74 = xla_tuple %v73
  %75 = xla_tuple %74
  %v76 = vxor.u32 %v73, 2147483648
  %77 = xla_tuple %v76
  %s78 = scalar_lea.vmem %s1, 544
  %79 = vst [vmem:[%s78] sm:$0xff] %v76
  %s80 = scalar_lea.vmem %s0, 40
  %v81 = vld [vmem:[%s80] sm:$0xff]
  %82 = xla_tuple %v81
  %83 = xla_tuple %82
  %v84 = vxor.u32 %v81, 2147483648
  %85 = xla_tuple %v84
  %s86 = scalar_lea.vmem %s1, 40
  %87 = vst [vmem:[%s86] sm:$0xff] %v84
  %s88 = scalar_lea.vmem %s0, 552
  %v89 = vld [vmem:[%s88] sm:$0xff]
  %90 = xla_tuple %v89
  %91 = xla_tuple %90
  %v92 = vxor.u32 %v89, 2147483648
  %93 = xla_tuple %v92
  %s94 = scalar_lea.vmem %s1, 552
  %95 = vst [vmem:[%s94] sm:$0xff] %v92
  %s96 = scalar_lea.vmem %s0, 48
  %v97 = vld [vmem:[%s96] sm:$0xff]
  %98 = xla_tuple %v97
  %99 = xla_tuple %98
  %v100 = vxor.u32 %v97, 2147483648
  %101 = xla_tuple %v100
  %s102 = scalar_lea.vmem %s1, 48
  %103 = vst [vmem:[%s102] sm:$0xff] %v100
  %s104 = scalar_lea.vmem %s0, 560
  %v105 = vld [vmem:[%s104] sm:$0xff]
  %106 = xla_tuple %v105
  %107 = xla_tuple %106
  %v108 = vxor.u32 %v105, 2147483648
  %109 = xla_tuple %v108
  %s110 = scalar_lea.vmem %s1, 560
  %111 = vst [vmem:[%s110] sm:$0xff] %v108
  %s112 = scalar_lea.vmem %s0, 56
  %v113 = vld [vmem:[%s112] sm:$0xff]
  %114 = xla_tuple %v113
  %115 = xla_tuple %114
  %v116 = vxor.u32 %v113, 2147483648
  %117 = xla_tuple %v116
  %s118 = scalar_lea.vmem %s1, 56
  %119 = vst [vmem:[%s118] sm:$0xff] %v116
  %s120 = scalar_lea.vmem %s0, 568
  %v121 = vld [vmem:[%s120] sm:$0xff]
  %122 = xla_tuple %v121
  %123 = xla_tuple %122
  %v124 = vxor.u32 %v121, 2147483648
  %125 = xla_tuple %v124
  %s126 = scalar_lea.vmem %s1, 568
  %127 = vst [vmem:[%s126] sm:$0xff] %v124
  %s128 = scalar_lea.vmem %s0, 64
  %v129 = vld [vmem:[%s128] sm:$0xff]
  %130 = xla_tuple %v129
  %131 = xla_tuple %130
  %v132 = vxor.u32 %v129, 2147483648
  %133 = xla_tuple %v132
  %s134 = scalar_lea.vmem %s1, 64
  %135 = vst [vmem:[%s134] sm:$0xff] %v132
  %s136 = scalar_lea.vmem %s0, 576
  %v137 = vld [vmem:[%s136] sm:$0xff]
  %138 = xla_tuple %v137
  %139 = xla_tuple %138
  %v140 = vxor.u32 %v137, 2147483648
  %141 = xla_tuple %v140
  %s142 = scalar_lea.vmem %s1, 576
  %143 = vst [vmem:[%s142] sm:$0xff] %v140
  %s144 = scalar_lea.vmem %s0, 72
  %v145 = vld [vmem:[%s144] sm:$0xff]
  %146 = xla_tuple %v145
  %147 = xla_tuple %146
  %v148 = vxor.u32 %v145, 2147483648
  %149 = xla_tuple %v148
  %s150 = scalar_lea.vmem %s1, 72
  %151 = vst [vmem:[%s150] sm:$0xff] %v148
  %s152 = scalar_lea.vmem %s0, 584
  %v153 = vld [vmem:[%s152] sm:$0xff]
  %154 = xla_tuple %v153
  %155 = xla_tuple %154
  %v156 = vxor.u32 %v153, 2147483648
  %157 = xla_tuple %v156
  %s158 = scalar_lea.vmem %s1, 584
  %159 = vst [vmem:[%s158] sm:$0xff] %v156
  %s160 = scalar_lea.vmem %s0, 80
  %v161 = vld [vmem:[%s160] sm:$0xff]
  %162 = xla_tuple %v161
  %163 = xla_tuple %162
  %v164 = vxor.u32 %v161, 2147483648
  %165 = xla_tuple %v164
  %s166 = scalar_lea.vmem %s1, 80
  %167 = vst [vmem:[%s166] sm:$0xff] %v164
  %s168 = scalar_lea.vmem %s0, 592
  %v169 = vld [vmem:[%s168] sm:$0xff]
  %170 = xla_tuple %v169
  %171 = xla_tuple %170
  %v172 = vxor.u32 %v169, 2147483648
  %173 = xla_tuple %v172
  %s174 = scalar_lea.vmem %s1, 592
  %175 = vst [vmem:[%s174] sm:$0xff] %v172
  %s176 = scalar_lea.vmem %s0, 88
  %v177 = vld [vmem:[%s176] sm:$0xff]
  %178 = xla_tuple %v177
  %179 = xla_tuple %178
  %v180 = vxor.u32 %v177, 2147483648
  %181 = xla_tuple %v180
  %s182 = scalar_lea.vmem %s1, 88
  %183 = vst [vmem:[%s182] sm:$0xff] %v180
  %s184 = scalar_lea.vmem %s0, 600
  %v185 = vld [vmem:[%s184] sm:$0xff]
  %186 = xla_tuple %v185
  %187 = xla_tuple %186
  %v188 = vxor.u32 %v185, 2147483648
  %189 = xla_tuple %v188
  %s190 = scalar_lea.vmem %s1, 600
  %191 = vst [vmem:[%s190] sm:$0xff] %v188
  %s192 = scalar_lea.vmem %s0, 96
  %v193 = vld [vmem:[%s192] sm:$0xff]
  %194 = xla_tuple %v193
  %195 = xla_tuple %194
  %v196 = vxor.u32 %v193, 2147483648
  %197 = xla_tuple %v196
  %s198 = scalar_lea.vmem %s1, 96
  %199 = vst [vmem:[%s198] sm:$0xff] %v196
  %s200 = scalar_lea.vmem %s0, 608
  %v201 = vld [vmem:[%s200] sm:$0xff]
  %202 = xla_tuple %v201
  %203 = xla_tuple %202
  %v204 = vxor.u32 %v201, 2147483648
  %205 = xla_tuple %v204
  %s206 = scalar_lea.vmem %s1, 608
  %207 = vst [vmem:[%s206] sm:$0xff] %v204
  %s208 = scalar_lea.vmem %s0, 104
  %v209 = vld [vmem:[%s208] sm:$0xff]
  %210 = xla_tuple %v209
  %211 = xla_tuple %210
  %v212 = vxor.u32 %v209, 2147483648
  %213 = xla_tuple %v212
  %s214 = scalar_lea.vmem %s1, 104
  %215 = vst [vmem:[%s214] sm:$0xff] %v212
  %s216 = scalar_lea.vmem %s0, 616
  %v217 = vld [vmem:[%s216] sm:$0xff]
  %218 = xla_tuple %v217
  %219 = xla_tuple %218
  %v220 = vxor.u32 %v217, 2147483648
  %221 = xla_tuple %v220
  %s222 = scalar_lea.vmem %s1, 616
  %223 = vst [vmem:[%s222] sm:$0xff] %v220
  %s224 = scalar_lea.vmem %s0, 112
  %v225 = vld [vmem:[%s224] sm:$0xff]
  %226 = xla_tuple %v225
  %227 = xla_tuple %226
  %v228 = vxor.u32 %v225, 2147483648
  %229 = xla_tuple %v228
  %s230 = scalar_lea.vmem %s1, 112
  %231 = vst [vmem:[%s230] sm:$0xff] %v228
  %s232 = scalar_lea.vmem %s0, 624
  %v233 = vld [vmem:[%s232] sm:$0xff]
  %234 = xla_tuple %v233
  %235 = xla_tuple %234
  %v236 = vxor.u32 %v233, 2147483648
  %237 = xla_tuple %v236
  %s238 = scalar_lea.vmem %s1, 624
  %239 = vst [vmem:[%s238] sm:$0xff] %v236
  %s240 = scalar_lea.vmem %s0, 120
  %v241 = vld [vmem:[%s240] sm:$0xff]
  %242 = xla_tuple %v241
  %243 = xla_tuple %242
  %v244 = vxor.u32 %v241, 2147483648
  %245 = xla_tuple %v244
  %s246 = scalar_lea.vmem %s1, 120
  %247 = vst [vmem:[%s246] sm:$0xff] %v244
  %s248 = scalar_lea.vmem %s0, 632
  %v249 = vld [vmem:[%s248] sm:$0xff]
  %250 = xla_tuple %v249
  %251 = xla_tuple %250
  %v252 = vxor.u32 %v249, 2147483648
  %253 = xla_tuple %v252
  %s254 = scalar_lea.vmem %s1, 632
  %255 = vst [vmem:[%s254] sm:$0xff] %v252
  %s256 = scalar_lea.vmem %s0, 128
  %v257 = vld [vmem:[%s256] sm:$0xff]
  %258 = xla_tuple %v257
  %259 = xla_tuple %258
  %v260 = vxor.u32 %v257, 2147483648
  %261 = xla_tuple %v260
  %s262 = scalar_lea.vmem %s1, 128
  %263 = vst [vmem:[%s262] sm:$0xff] %v260
  %s264 = scalar_lea.vmem %s0, 640
  %v265 = vld [vmem:[%s264] sm:$0xff]
  %266 = xla_tuple %v265
  %267 = xla_tuple %266
  %v268 = vxor.u32 %v265, 2147483648
  %269 = xla_tuple %v268
  %s270 = scalar_lea.vmem %s1, 640
  %271 = vst [vmem:[%s270] sm:$0xff] %v268
  %s272 = scalar_lea.vmem %s0, 136
  %v273 = vld [vmem:[%s272] sm:$0xff]
  %274 = xla_tuple %v273
  %275 = xla_tuple %274
  %v276 = vxor.u32 %v273, 2147483648
  %277 = xla_tuple %v276
  %s278 = scalar_lea.vmem %s1, 136
  %279 = vst [vmem:[%s278] sm:$0xff] %v276
  %s280 = scalar_lea.vmem %s0, 648
  %v281 = vld [vmem:[%s280] sm:$0xff]
  %282 = xla_tuple %v281
  %283 = xla_tuple %282
  %v284 = vxor.u32 %v281, 2147483648
  %285 = xla_tuple %v284
  %s286 = scalar_lea.vmem %s1, 648
  %287 = vst [vmem:[%s286] sm:$0xff] %v284
  %s288 = scalar_lea.vmem %s0, 144
  %v289 = vld [vmem:[%s288] sm:$0xff]
  %290 = xla_tuple %v289
  %291 = xla_tuple %290
  %v292 = vxor.u32 %v289, 2147483648
  %293 = xla_tuple %v292
  %s294 = scalar_lea.vmem %s1, 144
  %295 = vst [vmem:[%s294] sm:$0xff] %v292
  %s296 = scalar_lea.vmem %s0, 656
  %v297 = vld [vmem:[%s296] sm:$0xff]
  %298 = xla_tuple %v297
  %299 = xla_tuple %298
  %v300 = vxor.u32 %v297, 2147483648
  %301 = xla_tuple %v300
  %s302 = scalar_lea.vmem %s1, 656
  %303 = vst [vmem:[%s302] sm:$0xff] %v300
  %s304 = scalar_lea.vmem %s0, 152
  %v305 = vld [vmem:[%s304] sm:$0xff]
  %306 = xla_tuple %v305
  %307 = xla_tuple %306
  %v308 = vxor.u32 %v305, 2147483648
  %309 = xla_tuple %v308
  %s310 = scalar_lea.vmem %s1, 152
  %311 = vst [vmem:[%s310] sm:$0xff] %v308
  %s312 = scalar_lea.vmem %s0, 664
  %v313 = vld [vmem:[%s312] sm:$0xff]
  %314 = xla_tuple %v313
  %315 = xla_tuple %314
  %v316 = vxor.u32 %v313, 2147483648
  %317 = xla_tuple %v316
  %s318 = scalar_lea.vmem %s1, 664
  %319 = vst [vmem:[%s318] sm:$0xff] %v316
  %s320 = scalar_lea.vmem %s0, 160
  %v321 = vld [vmem:[%s320] sm:$0xff]
  %322 = xla_tuple %v321
  %323 = xla_tuple %322
  %v324 = vxor.u32 %v321, 2147483648
  %325 = xla_tuple %v324
  %s326 = scalar_lea.vmem %s1, 160
  %327 = vst [vmem:[%s326] sm:$0xff] %v324
  %s328 = scalar_lea.vmem %s0, 672
  %v329 = vld [vmem:[%s328] sm:$0xff]
  %330 = xla_tuple %v329
  %331 = xla_tuple %330
  %v332 = vxor.u32 %v329, 2147483648
  %333 = xla_tuple %v332
  %s334 = scalar_lea.vmem %s1, 672
  %335 = vst [vmem:[%s334] sm:$0xff] %v332
  %s336 = scalar_lea.vmem %s0, 168
  %v337 = vld [vmem:[%s336] sm:$0xff]
  %338 = xla_tuple %v337
  %339 = xla_tuple %338
  %v340 = vxor.u32 %v337, 2147483648
  %341 = xla_tuple %v340
  %s342 = scalar_lea.vmem %s1, 168
  %343 = vst [vmem:[%s342] sm:$0xff] %v340
  %s344 = scalar_lea.vmem %s0, 680
  %v345 = vld [vmem:[%s344] sm:$0xff]
  %346 = xla_tuple %v345
  %347 = xla_tuple %346
  %v348 = vxor.u32 %v345, 2147483648
  %349 = xla_tuple %v348
  %s350 = scalar_lea.vmem %s1, 680
  %351 = vst [vmem:[%s350] sm:$0xff] %v348
  %s352 = scalar_lea.vmem %s0, 176
  %v353 = vld [vmem:[%s352] sm:$0xff]
  %354 = xla_tuple %v353
  %355 = xla_tuple %354
  %v356 = vxor.u32 %v353, 2147483648
  %357 = xla_tuple %v356
  %s358 = scalar_lea.vmem %s1, 176
  %359 = vst [vmem:[%s358] sm:$0xff] %v356
  %s360 = scalar_lea.vmem %s0, 688
  %v361 = vld [vmem:[%s360] sm:$0xff]
  %362 = xla_tuple %v361
  %363 = xla_tuple %362
  %v364 = vxor.u32 %v361, 2147483648
  %365 = xla_tuple %v364
  %s366 = scalar_lea.vmem %s1, 688
  %367 = vst [vmem:[%s366] sm:$0xff] %v364
  %s368 = scalar_lea.vmem %s0, 184
  %v369 = vld [vmem:[%s368] sm:$0xff]
  %370 = xla_tuple %v369
  %371 = xla_tuple %370
  %v372 = vxor.u32 %v369, 2147483648
  %373 = xla_tuple %v372
  %s374 = scalar_lea.vmem %s1, 184
  %375 = vst [vmem:[%s374] sm:$0xff] %v372
  %s376 = scalar_lea.vmem %s0, 696
  %v377 = vld [vmem:[%s376] sm:$0xff]
  %378 = xla_tuple %v377
  %379 = xla_tuple %378
  %v380 = vxor.u32 %v377, 2147483648
  %381 = xla_tuple %v380
  %s382 = scalar_lea.vmem %s1, 696
  %383 = vst [vmem:[%s382] sm:$0xff] %v380
  %s384 = scalar_lea.vmem %s0, 192
  %v385 = vld [vmem:[%s384] sm:$0xff]
  %386 = xla_tuple %v385
  %387 = xla_tuple %386
  %v388 = vxor.u32 %v385, 2147483648
  %389 = xla_tuple %v388
  %s390 = scalar_lea.vmem %s1, 192
  %391 = vst [vmem:[%s390] sm:$0xff] %v388
  %s392 = scalar_lea.vmem %s0, 704
  %v393 = vld [vmem:[%s392] sm:$0xff]
  %394 = xla_tuple %v393
  %395 = xla_tuple %394
  %v396 = vxor.u32 %v393, 2147483648
  %397 = xla_tuple %v396
  %s398 = scalar_lea.vmem %s1, 704
  %399 = vst [vmem:[%s398] sm:$0xff] %v396
  %s400 = scalar_lea.vmem %s0, 200
  %v401 = vld [vmem:[%s400] sm:$0xff]
  %402 = xla_tuple %v401
  %403 = xla_tuple %402
  %v404 = vxor.u32 %v401, 2147483648
  %405 = xla_tuple %v404
  %s406 = scalar_lea.vmem %s1, 200
  %407 = vst [vmem:[%s406] sm:$0xff] %v404
  %s408 = scalar_lea.vmem %s0, 712
  %v409 = vld [vmem:[%s408] sm:$0xff]
  %410 = xla_tuple %v409
  %411 = xla_tuple %410
  %v412 = vxor.u32 %v409, 2147483648
  %413 = xla_tuple %v412
  %s414 = scalar_lea.vmem %s1, 712
  %415 = vst [vmem:[%s414] sm:$0xff] %v412
  %s416 = scalar_lea.vmem %s0, 208
  %v417 = vld [vmem:[%s416] sm:$0xff]
  %418 = xla_tuple %v417
  %419 = xla_tuple %418
  %v420 = vxor.u32 %v417, 2147483648
  %421 = xla_tuple %v420
  %s422 = scalar_lea.vmem %s1, 208
  %423 = vst [vmem:[%s422] sm:$0xff] %v420
  %s424 = scalar_lea.vmem %s0, 720
  %v425 = vld [vmem:[%s424] sm:$0xff]
  %426 = xla_tuple %v425
  %427 = xla_tuple %426
  %v428 = vxor.u32 %v425, 2147483648
  %429 = xla_tuple %v428
  %s430 = scalar_lea.vmem %s1, 720
  %431 = vst [vmem:[%s430] sm:$0xff] %v428
  %s432 = scalar_lea.vmem %s0, 216
  %v433 = vld [vmem:[%s432] sm:$0xff]
  %434 = xla_tuple %v433
  %435 = xla_tuple %434
  %v436 = vxor.u32 %v433, 2147483648
  %437 = xla_tuple %v436
  %s438 = scalar_lea.vmem %s1, 216
  %439 = vst [vmem:[%s438] sm:$0xff] %v436
  %s440 = scalar_lea.vmem %s0, 728
  %v441 = vld [vmem:[%s440] sm:$0xff]
  %442 = xla_tuple %v441
  %443 = xla_tuple %442
  %v444 = vxor.u32 %v441, 2147483648
  %445 = xla_tuple %v444
  %s446 = scalar_lea.vmem %s1, 728
  %447 = vst [vmem:[%s446] sm:$0xff] %v444
  %s448 = scalar_lea.vmem %s0, 224
  %v449 = vld [vmem:[%s448] sm:$0xff]
  %450 = xla_tuple %v449
  %451 = xla_tuple %450
  %v452 = vxor.u32 %v449, 2147483648
  %453 = xla_tuple %v452
  %s454 = scalar_lea.vmem %s1, 224
  %455 = vst [vmem:[%s454] sm:$0xff] %v452
  %s456 = scalar_lea.vmem %s0, 736
  %v457 = vld [vmem:[%s456] sm:$0xff]
  %458 = xla_tuple %v457
  %459 = xla_tuple %458
  %v460 = vxor.u32 %v457, 2147483648
  %461 = xla_tuple %v460
  %s462 = scalar_lea.vmem %s1, 736
  %463 = vst [vmem:[%s462] sm:$0xff] %v460
  %s464 = scalar_lea.vmem %s0, 232
  %v465 = vld [vmem:[%s464] sm:$0xff]
  %466 = xla_tuple %v465
  %467 = xla_tuple %466
  %v468 = vxor.u32 %v465, 2147483648
  %469 = xla_tuple %v468
  %s470 = scalar_lea.vmem %s1, 232
  %471 = vst [vmem:[%s470] sm:$0xff] %v468
  %s472 = scalar_lea.vmem %s0, 744
  %v473 = vld [vmem:[%s472] sm:$0xff]
  %474 = xla_tuple %v473
  %475 = xla_tuple %474
  %v476 = vxor.u32 %v473, 2147483648
  %477 = xla_tuple %v476
  %s478 = scalar_lea.vmem %s1, 744
  %479 = vst [vmem:[%s478] sm:$0xff] %v476
  %s480 = scalar_lea.vmem %s0, 240
  %v481 = vld [vmem:[%s480] sm:$0xff]
  %482 = xla_tuple %v481
  %483 = xla_tuple %482
  %v484 = vxor.u32 %v481, 2147483648
  %485 = xla_tuple %v484
  %s486 = scalar_lea.vmem %s1, 240
  %487 = vst [vmem:[%s486] sm:$0xff] %v484
  %s488 = scalar_lea.vmem %s0, 752
  %v489 = vld [vmem:[%s488] sm:$0xff]
  %490 = xla_tuple %v489
  %491 = xla_tuple %490
  %v492 = vxor.u32 %v489, 2147483648
  %493 = xla_tuple %v492
  %s494 = scalar_lea.vmem %s1, 752
  %495 = vst [vmem:[%s494] sm:$0xff] %v492
  %s496 = scalar_lea.vmem %s0, 248
  %v497 = vld [vmem:[%s496] sm:$0xff]
  %498 = xla_tuple %v497
  %499 = xla_tuple %498
  %v500 = vxor.u32 %v497, 2147483648
  %501 = xla_tuple %v500
  %s502 = scalar_lea.vmem %s1, 248
  %503 = vst [vmem:[%s502] sm:$0xff] %v500
  %s504 = scalar_lea.vmem %s0, 760
  %v505 = vld [vmem:[%s504] sm:$0xff]
  %506 = xla_tuple %v505
  %507 = xla_tuple %506
  %v508 = vxor.u32 %v505, 2147483648
  %509 = xla_tuple %v508
  %s510 = scalar_lea.vmem %s1, 760
  %511 = vst [vmem:[%s510] sm:$0xff] %v508
  %s512 = scalar_lea.vmem %s0, 256
  %v513 = vld [vmem:[%s512] sm:$0xff]
  %514 = xla_tuple %v513
  %515 = xla_tuple %514
  %v516 = vxor.u32 %v513, 2147483648
  %517 = xla_tuple %v516
  %s518 = scalar_lea.vmem %s1, 256
  %519 = vst [vmem:[%s518] sm:$0xff] %v516
  %s520 = scalar_lea.vmem %s0, 768
  %v521 = vld [vmem:[%s520] sm:$0xff]
  %522 = xla_tuple %v521
  %523 = xla_tuple %522
  %v524 = vxor.u32 %v521, 2147483648
  %525 = xla_tuple %v524
  %s526 = scalar_lea.vmem %s1, 768
  %527 = vst [vmem:[%s526] sm:$0xff] %v524
  %s528 = scalar_lea.vmem %s0, 264
  %v529 = vld [vmem:[%s528] sm:$0xff]
  %530 = xla_tuple %v529
  %531 = xla_tuple %530
  %v532 = vxor.u32 %v529, 2147483648
  %533 = xla_tuple %v532
  %s534 = scalar_lea.vmem %s1, 264
  %535 = vst [vmem:[%s534] sm:$0xff] %v532
  %s536 = scalar_lea.vmem %s0, 776
  %v537 = vld [vmem:[%s536] sm:$0xff]
  %538 = xla_tuple %v537
  %539 = xla_tuple %538
  %v540 = vxor.u32 %v537, 2147483648
  %541 = xla_tuple %v540
  %s542 = scalar_lea.vmem %s1, 776
  %543 = vst [vmem:[%s542] sm:$0xff] %v540
  %s544 = scalar_lea.vmem %s0, 272
  %v545 = vld [vmem:[%s544] sm:$0xff]
  %546 = xla_tuple %v545
  %547 = xla_tuple %546
  %v548 = vxor.u32 %v545, 2147483648
  %549 = xla_tuple %v548
  %s550 = scalar_lea.vmem %s1, 272
  %551 = vst [vmem:[%s550] sm:$0xff] %v548
  %s552 = scalar_lea.vmem %s0, 784
  %v553 = vld [vmem:[%s552] sm:$0xff]
  %554 = xla_tuple %v553
  %555 = xla_tuple %554
  %v556 = vxor.u32 %v553, 2147483648
  %557 = xla_tuple %v556
  %s558 = scalar_lea.vmem %s1, 784
  %559 = vst [vmem:[%s558] sm:$0xff] %v556
  %s560 = scalar_lea.vmem %s0, 280
  %v561 = vld [vmem:[%s560] sm:$0xff]
  %562 = xla_tuple %v561
  %563 = xla_tuple %562
  %v564 = vxor.u32 %v561, 2147483648
  %565 = xla_tuple %v564
  %s566 = scalar_lea.vmem %s1, 280
  %567 = vst [vmem:[%s566] sm:$0xff] %v564
  %s568 = scalar_lea.vmem %s0, 792
  %v569 = vld [vmem:[%s568] sm:$0xff]
  %570 = xla_tuple %v569
  %571 = xla_tuple %570
  %v572 = vxor.u32 %v569, 2147483648
  %573 = xla_tuple %v572
  %s574 = scalar_lea.vmem %s1, 792
  %575 = vst [vmem:[%s574] sm:$0xff] %v572
  %s576 = scalar_lea.vmem %s0, 288
  %v577 = vld [vmem:[%s576] sm:$0xff]
  %578 = xla_tuple %v577
  %579 = xla_tuple %578
  %v580 = vxor.u32 %v577, 2147483648
  %581 = xla_tuple %v580
  %s582 = scalar_lea.vmem %s1, 288
  %583 = vst [vmem:[%s582] sm:$0xff] %v580
  %s584 = scalar_lea.vmem %s0, 800
  %v585 = vld [vmem:[%s584] sm:$0xff]
  %586 = xla_tuple %v585
  %587 = xla_tuple %586
  %v588 = vxor.u32 %v585, 2147483648
  %589 = xla_tuple %v588
  %s590 = scalar_lea.vmem %s1, 800
  %591 = vst [vmem:[%s590] sm:$0xff] %v588
  %s592 = scalar_lea.vmem %s0, 296
  %v593 = vld [vmem:[%s592] sm:$0xff]
  %594 = xla_tuple %v593
  %595 = xla_tuple %594
  %v596 = vxor.u32 %v593, 2147483648
  %597 = xla_tuple %v596
  %s598 = scalar_lea.vmem %s1, 296
  %599 = vst [vmem:[%s598] sm:$0xff] %v596
  %s600 = scalar_lea.vmem %s0, 808
  %v601 = vld [vmem:[%s600] sm:$0xff]
  %602 = xla_tuple %v601
  %603 = xla_tuple %602
  %v604 = vxor.u32 %v601, 2147483648
  %605 = xla_tuple %v604
  %s606 = scalar_lea.vmem %s1, 808
  %607 = vst [vmem:[%s606] sm:$0xff] %v604
  %s608 = scalar_lea.vmem %s0, 304
  %v609 = vld [vmem:[%s608] sm:$0xff]
  %610 = xla_tuple %v609
  %611 = xla_tuple %610
  %v612 = vxor.u32 %v609, 2147483648
  %613 = xla_tuple %v612
  %s614 = scalar_lea.vmem %s1, 304
  %615 = vst [vmem:[%s614] sm:$0xff] %v612
  %s616 = scalar_lea.vmem %s0, 816
  %v617 = vld [vmem:[%s616] sm:$0xff]
  %618 = xla_tuple %v617
  %619 = xla_tuple %618
  %v620 = vxor.u32 %v617, 2147483648
  %621 = xla_tuple %v620
  %s622 = scalar_lea.vmem %s1, 816
  %623 = vst [vmem:[%s622] sm:$0xff] %v620
  %s624 = scalar_lea.vmem %s0, 312
  %v625 = vld [vmem:[%s624] sm:$0xff]
  %626 = xla_tuple %v625
  %627 = xla_tuple %626
  %v628 = vxor.u32 %v625, 2147483648
  %629 = xla_tuple %v628
  %s630 = scalar_lea.vmem %s1, 312
  %631 = vst [vmem:[%s630] sm:$0xff] %v628
  %s632 = scalar_lea.vmem %s0, 824
  %v633 = vld [vmem:[%s632] sm:$0xff]
  %634 = xla_tuple %v633
  %635 = xla_tuple %634
  %v636 = vxor.u32 %v633, 2147483648
  %637 = xla_tuple %v636
  %s638 = scalar_lea.vmem %s1, 824
  %639 = vst [vmem:[%s638] sm:$0xff] %v636
  %s640 = scalar_lea.vmem %s0, 320
  %v641 = vld [vmem:[%s640] sm:$0xff]
  %642 = xla_tuple %v641
  %643 = xla_tuple %642
  %v644 = vxor.u32 %v641, 2147483648
  %645 = xla_tuple %v644
  %s646 = scalar_lea.vmem %s1, 320
  %647 = vst [vmem:[%s646] sm:$0xff] %v644
  %s648 = scalar_lea.vmem %s0, 832
  %v649 = vld [vmem:[%s648] sm:$0xff]
  %650 = xla_tuple %v649
  %651 = xla_tuple %650
  %v652 = vxor.u32 %v649, 2147483648
  %653 = xla_tuple %v652
  %s654 = scalar_lea.vmem %s1, 832
  %655 = vst [vmem:[%s654] sm:$0xff] %v652
  %s656 = scalar_lea.vmem %s0, 328
  %v657 = vld [vmem:[%s656] sm:$0xff]
  %658 = xla_tuple %v657
  %659 = xla_tuple %658
  %v660 = vxor.u32 %v657, 2147483648
  %661 = xla_tuple %v660
  %s662 = scalar_lea.vmem %s1, 328
  %663 = vst [vmem:[%s662] sm:$0xff] %v660
  %s664 = scalar_lea.vmem %s0, 840
  %v665 = vld [vmem:[%s664] sm:$0xff]
  %666 = xla_tuple %v665
  %667 = xla_tuple %666
  %v668 = vxor.u32 %v665, 2147483648
  %669 = xla_tuple %v668
  %s670 = scalar_lea.vmem %s1, 840
  %671 = vst [vmem:[%s670] sm:$0xff] %v668
  %s672 = scalar_lea.vmem %s0, 336
  %v673 = vld [vmem:[%s672] sm:$0xff]
  %674 = xla_tuple %v673
  %675 = xla_tuple %674
  %v676 = vxor.u32 %v673, 2147483648
  %677 = xla_tuple %v676
  %s678 = scalar_lea.vmem %s1, 336
  %679 = vst [vmem:[%s678] sm:$0xff] %v676
  %s680 = scalar_lea.vmem %s0, 848
  %v681 = vld [vmem:[%s680] sm:$0xff]
  %682 = xla_tuple %v681
  %683 = xla_tuple %682
  %v684 = vxor.u32 %v681, 2147483648
  %685 = xla_tuple %v684
  %s686 = scalar_lea.vmem %s1, 848
  %687 = vst [vmem:[%s686] sm:$0xff] %v684
  %s688 = scalar_lea.vmem %s0, 344
  %v689 = vld [vmem:[%s688] sm:$0xff]
  %690 = xla_tuple %v689
  %691 = xla_tuple %690
  %v692 = vxor.u32 %v689, 2147483648
  %693 = xla_tuple %v692
  %s694 = scalar_lea.vmem %s1, 344
  %695 = vst [vmem:[%s694] sm:$0xff] %v692
  %s696 = scalar_lea.vmem %s0, 856
  %v697 = vld [vmem:[%s696] sm:$0xff]
  %698 = xla_tuple %v697
  %699 = xla_tuple %698
  %v700 = vxor.u32 %v697, 2147483648
  %701 = xla_tuple %v700
  %s702 = scalar_lea.vmem %s1, 856
  %703 = vst [vmem:[%s702] sm:$0xff] %v700
  %s704 = scalar_lea.vmem %s0, 352
  %v705 = vld [vmem:[%s704] sm:$0xff]
  %706 = xla_tuple %v705
  %707 = xla_tuple %706
  %v708 = vxor.u32 %v705, 2147483648
  %709 = xla_tuple %v708
  %s710 = scalar_lea.vmem %s1, 352
  %711 = vst [vmem:[%s710] sm:$0xff] %v708
  %s712 = scalar_lea.vmem %s0, 864
  %v713 = vld [vmem:[%s712] sm:$0xff]
  %714 = xla_tuple %v713
  %715 = xla_tuple %714
  %v716 = vxor.u32 %v713, 2147483648
  %717 = xla_tuple %v716
  %s718 = scalar_lea.vmem %s1, 864
  %719 = vst [vmem:[%s718] sm:$0xff] %v716
  %s720 = scalar_lea.vmem %s0, 360
  %v721 = vld [vmem:[%s720] sm:$0xff]
  %722 = xla_tuple %v721
  %723 = xla_tuple %722
  %v724 = vxor.u32 %v721, 2147483648
  %725 = xla_tuple %v724
  %s726 = scalar_lea.vmem %s1, 360
  %727 = vst [vmem:[%s726] sm:$0xff] %v724
  %s728 = scalar_lea.vmem %s0, 872
  %v729 = vld [vmem:[%s728] sm:$0xff]
  %730 = xla_tuple %v729
  %731 = xla_tuple %730
  %v732 = vxor.u32 %v729, 2147483648
  %733 = xla_tuple %v732
  %s734 = scalar_lea.vmem %s1, 872
  %735 = vst [vmem:[%s734] sm:$0xff] %v732
  %s736 = scalar_lea.vmem %s0, 368
  %v737 = vld [vmem:[%s736] sm:$0xff]
  %738 = xla_tuple %v737
  %739 = xla_tuple %738
  %v740 = vxor.u32 %v737, 2147483648
  %741 = xla_tuple %v740
  %s742 = scalar_lea.vmem %s1, 368
  %743 = vst [vmem:[%s742] sm:$0xff] %v740
  %s744 = scalar_lea.vmem %s0, 880
  %v745 = vld [vmem:[%s744] sm:$0xff]
  %746 = xla_tuple %v745
  %747 = xla_tuple %746
  %v748 = vxor.u32 %v745, 2147483648
  %749 = xla_tuple %v748
  %s750 = scalar_lea.vmem %s1, 880
  %751 = vst [vmem:[%s750] sm:$0xff] %v748
  %s752 = scalar_lea.vmem %s0, 376
  %v753 = vld [vmem:[%s752] sm:$0xff]
  %754 = xla_tuple %v753
  %755 = xla_tuple %754
  %v756 = vxor.u32 %v753, 2147483648
  %757 = xla_tuple %v756
  %s758 = scalar_lea.vmem %s1, 376
  %759 = vst [vmem:[%s758] sm:$0xff] %v756
  %s760 = scalar_lea.vmem %s0, 888
  %v761 = vld [vmem:[%s760] sm:$0xff]
  %762 = xla_tuple %v761
  %763 = xla_tuple %762
  %v764 = vxor.u32 %v761, 2147483648
  %765 = xla_tuple %v764
  %s766 = scalar_lea.vmem %s1, 888
  %767 = vst [vmem:[%s766] sm:$0xff] %v764
  %s768 = scalar_lea.vmem %s0, 384
  %v769 = vld [vmem:[%s768] sm:$0xff]
  %770 = xla_tuple %v769
  %771 = xla_tuple %770
  %v772 = vxor.u32 %v769, 2147483648
  %773 = xla_tuple %v772
  %s774 = scalar_lea.vmem %s1, 384
  %775 = vst [vmem:[%s774] sm:$0xff] %v772
  %s776 = scalar_lea.vmem %s0, 896
  %v777 = vld [vmem:[%s776] sm:$0xff]
  %778 = xla_tuple %v777
  %779 = xla_tuple %778
  %v780 = vxor.u32 %v777, 2147483648
  %781 = xla_tuple %v780
  %s782 = scalar_lea.vmem %s1, 896
  %783 = vst [vmem:[%s782] sm:$0xff] %v780
  %s784 = scalar_lea.vmem %s0, 392
  %v785 = vld [vmem:[%s784] sm:$0xff]
  %786 = xla_tuple %v785
  %787 = xla_tuple %786
  %v788 = vxor.u32 %v785, 2147483648
  %789 = xla_tuple %v788
  %s790 = scalar_lea.vmem %s1, 392
  %791 = vst [vmem:[%s790] sm:$0xff] %v788
  %s792 = scalar_lea.vmem %s0, 904
  %v793 = vld [vmem:[%s792] sm:$0xff]
  %794 = xla_tuple %v793
  %795 = xla_tuple %794
  %v796 = vxor.u32 %v793, 2147483648
  %797 = xla_tuple %v796
  %s798 = scalar_lea.vmem %s1, 904
  %799 = vst [vmem:[%s798] sm:$0xff] %v796
  %s800 = scalar_lea.vmem %s0, 400
  %v801 = vld [vmem:[%s800] sm:$0xff]
  %802 = xla_tuple %v801
  %803 = xla_tuple %802
  %v804 = vxor.u32 %v801, 2147483648
  %805 = xla_tuple %v804
  %s806 = scalar_lea.vmem %s1, 400
  %807 = vst [vmem:[%s806] sm:$0xff] %v804
  %s808 = scalar_lea.vmem %s0, 912
  %v809 = vld [vmem:[%s808] sm:$0xff]
  %810 = xla_tuple %v809
  %811 = xla_tuple %810
  %v812 = vxor.u32 %v809, 2147483648
  %813 = xla_tuple %v812
  %s814 = scalar_lea.vmem %s1, 912
  %815 = vst [vmem:[%s814] sm:$0xff] %v812
  %s816 = scalar_lea.vmem %s0, 408
  %v817 = vld [vmem:[%s816] sm:$0xff]
  %818 = xla_tuple %v817
  %819 = xla_tuple %818
  %v820 = vxor.u32 %v817, 2147483648
  %821 = xla_tuple %v820
  %s822 = scalar_lea.vmem %s1, 408
  %823 = vst [vmem:[%s822] sm:$0xff] %v820
  %s824 = scalar_lea.vmem %s0, 920
  %v825 = vld [vmem:[%s824] sm:$0xff]
  %826 = xla_tuple %v825
  %827 = xla_tuple %826
  %v828 = vxor.u32 %v825, 2147483648
  %829 = xla_tuple %v828
  %s830 = scalar_lea.vmem %s1, 920
  %831 = vst [vmem:[%s830] sm:$0xff] %v828
  %s832 = scalar_lea.vmem %s0, 416
  %v833 = vld [vmem:[%s832] sm:$0xff]
  %834 = xla_tuple %v833
  %835 = xla_tuple %834
  %v836 = vxor.u32 %v833, 2147483648
  %837 = xla_tuple %v836
  %s838 = scalar_lea.vmem %s1, 416
  %839 = vst [vmem:[%s838] sm:$0xff] %v836
  %s840 = scalar_lea.vmem %s0, 928
  %v841 = vld [vmem:[%s840] sm:$0xff]
  %842 = xla_tuple %v841
  %843 = xla_tuple %842
  %v844 = vxor.u32 %v841, 2147483648
  %845 = xla_tuple %v844
  %s846 = scalar_lea.vmem %s1, 928
  %847 = vst [vmem:[%s846] sm:$0xff] %v844
  %s848 = scalar_lea.vmem %s0, 424
  %v849 = vld [vmem:[%s848] sm:$0xff]
  %850 = xla_tuple %v849
  %851 = xla_tuple %850
  %v852 = vxor.u32 %v849, 2147483648
  %853 = xla_tuple %v852
  %s854 = scalar_lea.vmem %s1, 424
  %855 = vst [vmem:[%s854] sm:$0xff] %v852
  %s856 = scalar_lea.vmem %s0, 936
  %v857 = vld [vmem:[%s856] sm:$0xff]
  %858 = xla_tuple %v857
  %859 = xla_tuple %858
  %v860 = vxor.u32 %v857, 2147483648
  %861 = xla_tuple %v860
  %s862 = scalar_lea.vmem %s1, 936
  %863 = vst [vmem:[%s862] sm:$0xff] %v860
  %s864 = scalar_lea.vmem %s0, 432
  %v865 = vld [vmem:[%s864] sm:$0xff]
  %866 = xla_tuple %v865
  %867 = xla_tuple %866
  %v868 = vxor.u32 %v865, 2147483648
  %869 = xla_tuple %v868
  %s870 = scalar_lea.vmem %s1, 432
  %871 = vst [vmem:[%s870] sm:$0xff] %v868
  %s872 = scalar_lea.vmem %s0, 944
  %v873 = vld [vmem:[%s872] sm:$0xff]
  %874 = xla_tuple %v873
  %875 = xla_tuple %874
  %v876 = vxor.u32 %v873, 2147483648
  %877 = xla_tuple %v876
  %s878 = scalar_lea.vmem %s1, 944
  %879 = vst [vmem:[%s878] sm:$0xff] %v876
  %s880 = scalar_lea.vmem %s0, 440
  %v881 = vld [vmem:[%s880] sm:$0xff]
  %882 = xla_tuple %v881
  %883 = xla_tuple %882
  %v884 = vxor.u32 %v881, 2147483648
  %885 = xla_tuple %v884
  %s886 = scalar_lea.vmem %s1, 440
  %887 = vst [vmem:[%s886] sm:$0xff] %v884
  %s888 = scalar_lea.vmem %s0, 952
  %v889 = vld [vmem:[%s888] sm:$0xff]
  %890 = xla_tuple %v889
  %891 = xla_tuple %890
  %v892 = vxor.u32 %v889, 2147483648
  %893 = xla_tuple %v892
  %s894 = scalar_lea.vmem %s1, 952
  %895 = vst [vmem:[%s894] sm:$0xff] %v892
  %s896 = scalar_lea.vmem %s0, 448
  %v897 = vld [vmem:[%s896] sm:$0xff]
  %898 = xla_tuple %v897
  %899 = xla_tuple %898
  %v900 = vxor.u32 %v897, 2147483648
  %901 = xla_tuple %v900
  %s902 = scalar_lea.vmem %s1, 448
  %903 = vst [vmem:[%s902] sm:$0xff] %v900
  %s904 = scalar_lea.vmem %s0, 960
  %v905 = vld [vmem:[%s904] sm:$0xff]
  %906 = xla_tuple %v905
  %907 = xla_tuple %906
  %v908 = vxor.u32 %v905, 2147483648
  %909 = xla_tuple %v908
  %s910 = scalar_lea.vmem %s1, 960
  %911 = vst [vmem:[%s910] sm:$0xff] %v908
  %s912 = scalar_lea.vmem %s0, 456
  %v913 = vld [vmem:[%s912] sm:$0xff]
  %914 = xla_tuple %v913
  %915 = xla_tuple %914
  %v916 = vxor.u32 %v913, 2147483648
  %917 = xla_tuple %v916
  %s918 = scalar_lea.vmem %s1, 456
  %919 = vst [vmem:[%s918] sm:$0xff] %v916
  %s920 = scalar_lea.vmem %s0, 968
  %v921 = vld [vmem:[%s920] sm:$0xff]
  %922 = xla_tuple %v921
  %923 = xla_tuple %922
  %v924 = vxor.u32 %v921, 2147483648
  %925 = xla_tuple %v924
  %s926 = scalar_lea.vmem %s1, 968
  %927 = vst [vmem:[%s926] sm:$0xff] %v924
  %s928 = scalar_lea.vmem %s0, 464
  %v929 = vld [vmem:[%s928] sm:$0xff]
  %930 = xla_tuple %v929
  %931 = xla_tuple %930
  %v932 = vxor.u32 %v929, 2147483648
  %933 = xla_tuple %v932
  %s934 = scalar_lea.vmem %s1, 464
  %935 = vst [vmem:[%s934] sm:$0xff] %v932
  %s936 = scalar_lea.vmem %s0, 976
  %v937 = vld [vmem:[%s936] sm:$0xff]
  %938 = xla_tuple %v937
  %939 = xla_tuple %938
  %v940 = vxor.u32 %v937, 2147483648
  %941 = xla_tuple %v940
  %s942 = scalar_lea.vmem %s1, 976
  %943 = vst [vmem:[%s942] sm:$0xff] %v940
  %s944 = scalar_lea.vmem %s0, 472
  %v945 = vld [vmem:[%s944] sm:$0xff]
  %946 = xla_tuple %v945
  %947 = xla_tuple %946
  %v948 = vxor.u32 %v945, 2147483648
  %949 = xla_tuple %v948
  %s950 = scalar_lea.vmem %s1, 472
  %951 = vst [vmem:[%s950] sm:$0xff] %v948
  %s952 = scalar_lea.vmem %s0, 984
  %v953 = vld [vmem:[%s952] sm:$0xff]
  %954 = xla_tuple %v953
  %955 = xla_tuple %954
  %v956 = vxor.u32 %v953, 2147483648
  %957 = xla_tuple %v956
  %s958 = scalar_lea.vmem %s1, 984
  %959 = vst [vmem:[%s958] sm:$0xff] %v956
  %s960 = scalar_lea.vmem %s0, 480
  %v961 = vld [vmem:[%s960] sm:$0xff]
  %962 = xla_tuple %v961
  %963 = xla_tuple %962
  %v964 = vxor.u32 %v961, 2147483648
  %965 = xla_tuple %v964
  %s966 = scalar_lea.vmem %s1, 480
  %967 = vst [vmem:[%s966] sm:$0xff] %v964
  %s968 = scalar_lea.vmem %s0, 992
  %v969 = vld [vmem:[%s968] sm:$0xff]
  %970 = xla_tuple %v969
  %971 = xla_tuple %970
  %v972 = vxor.u32 %v969, 2147483648
  %973 = xla_tuple %v972
  %s974 = scalar_lea.vmem %s1, 992
  %975 = vst [vmem:[%s974] sm:$0xff] %v972
  %s976 = scalar_lea.vmem %s0, 488
  %v977 = vld [vmem:[%s976] sm:$0xff]
  %978 = xla_tuple %v977
  %979 = xla_tuple %978
  %v980 = vxor.u32 %v977, 2147483648
  %981 = xla_tuple %v980
  %s982 = scalar_lea.vmem %s1, 488
  %983 = vst [vmem:[%s982] sm:$0xff] %v980
  %s984 = scalar_lea.vmem %s0, 1000
  %v985 = vld [vmem:[%s984] sm:$0xff]
  %986 = xla_tuple %v985
  %987 = xla_tuple %986
  %v988 = vxor.u32 %v985, 2147483648
  %989 = xla_tuple %v988
  %s990 = scalar_lea.vmem %s1, 1000
  %991 = vst [vmem:[%s990] sm:$0xff] %v988
  %s992 = scalar_lea.vmem %s0, 496
  %v993 = vld [vmem:[%s992] sm:$0xff]
  %994 = xla_tuple %v993
  %995 = xla_tuple %994
  %v996 = vxor.u32 %v993, 2147483648
  %997 = xla_tuple %v996
  %s998 = scalar_lea.vmem %s1, 496
  %999 = vst [vmem:[%s998] sm:$0xff] %v996
  %s1000 = scalar_lea.vmem %s0, 1008
  %v1001 = vld [vmem:[%s1000] sm:$0xff]
  %1002 = xla_tuple %v1001
  %1003 = xla_tuple %1002
  %v1004 = vxor.u32 %v1001, 2147483648
  %1005 = xla_tuple %v1004
  %s1006 = scalar_lea.vmem %s1, 1008
  %1007 = vst [vmem:[%s1006] sm:$0xff] %v1004
  %s1008 = scalar_lea.vmem %s0, 504
  %v1009 = vld [vmem:[%s1008] sm:$0xff]
  %1010 = xla_tuple %v1009
  %1011 = xla_tuple %1010
  %v1012 = vxor.u32 %v1009, 2147483648
  %1013 = xla_tuple %v1012
  %s1014 = scalar_lea.vmem %s1, 504
  %1015 = vst [vmem:[%s1014] sm:$0xff] %v1012
  %s1016 = scalar_lea.vmem %s0, 1016
  %v1017 = vld [vmem:[%s1016] sm:$0xff]
  %1018 = xla_tuple %v1017
  %1019 = xla_tuple %1018
  %v1020 = vxor.u32 %v1017, 2147483648
  %1021 = xla_tuple %v1020
  %s1022 = scalar_lea.vmem %s1, 1016
  %1023 = vst [vmem:[%s1022] sm:$0xff] %v1020

// kernel: fp_forward.1
$region0: #{fp_forward.1}
  #allocation0 [shape = 'u32[]', space=smem, size = 0x4, offset = 0x4, fixed_abs, tag = 'smem constant byte address 0x4 - core index']
  #allocation1 [shape = 'u32[72,128]{1,0:T(1,128)}', space=vmem, size = 0x9000, scoped, tag = 'internal scratch']
  %s0 = inlined_call_operand.vmem [shape: bf16[1024,128], index: 0, kind: input, shape index: {}]
  %s1 = inlined_call_operand.vmem [shape: bf16[1024,64], index: 1, kind: input, shape index: {}]
  %s2 = inlined_call_operand.vmem [shape: bf16[128,256], index: 2, kind: input, shape index: {}]
  %s3 = inlined_call_operand.vmem [shape: bf16[64,256], index: 3, kind: input, shape index: {}]
  %s4 = inlined_call_operand.vmem [shape: f32[1,256], index: 4, kind: input, shape index: {}]
  %s5 = inlined_call_operand.vmem [shape: bf16[256,128], index: 5, kind: input, shape index: {}]
  %s6 = inlined_call_operand.vmem [shape: f32[1,128], index: 6, kind: input, shape index: {}]
  %s7 = inlined_call_operand.hbm [shape: f32[1024,128], index: 7, kind: output, shape index: {}]
  %s8 = sld [smem:[#allocation0]]
  $region61: #{fp_forward.1} parent=0
    _
  %s10 = ssub.s32 1, %s8
  %s11 = scalar_select 0, %s10, %s8
  $region1: #{fp_forward.1} parent=0
    #allocation2 [shape = 'u8[262144]{0}', space=vmem, size = 0x40000, scoped, tag = 'output window, operand 0']
    #allocation3 [shape = 's32[2]{0}', space=sflag, size = 0x8, scoped, tag = 'scoped memory for fp_forward.1']
    %12 = vsyncpa [#allocation3], 0
    %s13 = scalar_lea.sflag [#allocation3], 1
    %14 = vsyncpa %s13, 0
    loop: start=0, step=1, limit=6
    $region2: #{fp_forward.1} parent=1 // loop_pre_header
      _
    $region3: #{fp_forward.1} parent=1 // loop_header
      %s16 = sphi 0, %s20
      %p17 = scmp.ge.s32.totalorder %s16, 6
      %s26 = sphi 0, %s28
      %s29 = sphi 0, %s26
      %s30 = sphi 0, %s29
      %s46 = sphi 0, %s30
      %s52 = sphi 0, %s54
      %s55 = sphi 0, %s52
      %s56 = sphi 0, %s55
      %s72 = sphi 0, %s56
      %s76 = sphi 0, %s76
      %s78 = sphi 0, %s76
      %s79 = sphi 0, %s78
      %s93 = sphi 0, %s79
      %s97 = sphi 0, %s97
      %s99 = sphi 0, %s97
      %s100 = sphi 0, %s99
      %s114 = sphi 0, %s100
      %s118 = sphi 0, %s118
      %s120 = sphi 0, %s118
      %s121 = sphi 0, %s120
      %s135 = sphi 0, %s121
      %s139 = sphi 0, %s139
      %s141 = sphi 0, %s139
      %s142 = sphi 0, %s141
      %s156 = sphi 0, %s142
      %s160 = sphi 0, %s160
      %s162 = sphi 0, %s160
      %s163 = sphi 0, %s162
      %s177 = sphi 0, %s163
      %s183 = sphi 0, %s185
      %s186 = sphi 0, %s183
      %s187 = sphi 0, %s186
      %s203 = sphi 0, %s187
    $region4: #{fp_forward.1} parent=1 // loop_header_branch
      %19 = sbr.rel (%p17) target = $region8
    $region5: #{fp_forward.1} parent=1 // loop_body
      %s21 = ssub.s32 %s16, 1
      %s22 = ssub.s32 %s16, 2
      %s23 = sadd.s32 %s16, 1
      %s24 = ssub.s32 %s16, %s23
      %p25 = scmp.eq.s32.totalorder %s24, 0
      %s27 = sadd.s32 %s26, 1
      %s28 = scalar_select %p25, %s26, %s27
      %p31 = pneg %p25
      %p32 = scmp.eq.s32.totalorder %s16, 3
      %p33 = por %p31, %p32
      %p34 = scmp.ne.s32.totalorder %s26, %s29
      %p35 = scmp.eq.s32.totalorder %s16, 0
      %p36 = por %p34, %p35
      %p37 = scmp.ne.s32.totalorder %s26, %s29
      %p38 = scmp.eq.s32.totalorder %s21, 3
      %p39 = por %p37, %p38
      %p40 = scmp.ne.s32.totalorder %s29, %s30
      %p41 = scmp.eq.s32.totalorder %s21, 0
      %p42 = por %p40, %p41
      %p43 = scmp.ne.s32.totalorder %s29, %s30
      %p44 = scmp.eq.s32.totalorder %s22, 3
      %p45 = por %p43, %p44
      %p47 = scmp.ne.s32.totalorder %s30, %s46
      %p48 = scmp.eq.s32.totalorder %s22, 0
      %p49 = por %p47, %p48
      %s50 = ssub.s32 %s16, %s23
      %p51 = scmp.eq.s32.totalorder %s50, 0
      %s53 = sadd.s32 %s52, 1
      %s54 = scalar_select %p51, %s52, %s53
      %p57 = pneg %p51
      %p58 = scmp.eq.s32.totalorder %s16, 3
      %p59 = por %p57, %p58
      %p60 = scmp.ne.s32.totalorder %s52, %s55
      %p61 = scmp.eq.s32.totalorder %s16, 0
      %p62 = por %p60, %p61
      %p63 = scmp.ne.s32.totalorder %s52, %s55
      %p64 = scmp.eq.s32.totalorder %s21, 3
      %p65 = por %p63, %p64
      %p66 = scmp.ne.s32.totalorder %s55, %s56
      %p67 = scmp.eq.s32.totalorder %s21, 0
      %p68 = por %p66, %p67
      %p69 = scmp.ne.s32.totalorder %s55, %s56
      %p70 = scmp.eq.s32.totalorder %s22, 3
      %p71 = por %p69, %p70
      %p73 = scmp.ne.s32.totalorder %s56, %s72
      %p74 = scmp.eq.s32.totalorder %s22, 0
      %p75 = por %p73, %p74
      %s77 = sadd.s32 %s76, 1
      %p80 = scmp.eq.s32.totalorder %s16, 3
      %p81 = scmp.ne.s32.totalorder %s76, %s78
      %p82 = scmp.eq.s32.totalorder %s16, 0
      %p83 = por %p81, %p82
      %p84 = scmp.ne.s32.totalorder %s76, %s78
      %p85 = scmp.eq.s32.totalorder %s21, 3
      %p86 = por %p84, %p85
      %p87 = scmp.ne.s32.totalorder %s78, %s79
      %p88 = scmp.eq.s32.totalorder %s21, 0
      %p89 = por %p87, %p88
      %p90 = scmp.ne.s32.totalorder %s78, %s79
      %p91 = scmp.eq.s32.totalorder %s22, 3
      %p92 = por %p90, %p91
      %p94 = scmp.ne.s32.totalorder %s79, %s93
      %p95 = scmp.eq.s32.totalorder %s22, 0
      %p96 = por %p94, %p95
      %s98 = sadd.s32 %s97, 1
      %p101 = scmp.eq.s32.totalorder %s16, 3
      %p102 = scmp.ne.s32.totalorder %s97, %s99
      %p103 = scmp.eq.s32.totalorder %s16, 0
      %p104 = por %p102, %p103
      %p105 = scmp.ne.s32.totalorder %s97, %s99
      %p106 = scmp.eq.s32.totalorder %s21, 3
      %p107 = por %p105, %p106
      %p108 = scmp.ne.s32.totalorder %s99, %s100
      %p109 = scmp.eq.s32.totalorder %s21, 0
      %p110 = por %p108, %p109
      %p111 = scmp.ne.s32.totalorder %s99, %s100
      %p112 = scmp.eq.s32.totalorder %s22, 3
      %p113 = por %p111, %p112
      %p115 = scmp.ne.s32.totalorder %s100, %s114
      %p116 = scmp.eq.s32.totalorder %s22, 0
      %p117 = por %p115, %p116
      %s119 = sadd.s32 %s118, 1
      %p122 = scmp.eq.s32.totalorder %s16, 3
      %p123 = scmp.ne.s32.totalorder %s118, %s120
      %p124 = scmp.eq.s32.totalorder %s16, 0
      %p125 = por %p123, %p124
      %p126 = scmp.ne.s32.totalorder %s118, %s120
      %p127 = scmp.eq.s32.totalorder %s21, 3
      %p128 = por %p126, %p127
      %p129 = scmp.ne.s32.totalorder %s120, %s121
      %p130 = scmp.eq.s32.totalorder %s21, 0
      %p131 = por %p129, %p130
      %p132 = scmp.ne.s32.totalorder %s120, %s121
      %p133 = scmp.eq.s32.totalorder %s22, 3
      %p134 = por %p132, %p133
      %p136 = scmp.ne.s32.totalorder %s121, %s135
      %p137 = scmp.eq.s32.totalorder %s22, 0
      %p138 = por %p136, %p137
      %s140 = sadd.s32 %s139, 1
      %p143 = scmp.eq.s32.totalorder %s16, 3
      %p144 = scmp.ne.s32.totalorder %s139, %s141
      %p145 = scmp.eq.s32.totalorder %s16, 0
      %p146 = por %p144, %p145
      %p147 = scmp.ne.s32.totalorder %s139, %s141
      %p148 = scmp.eq.s32.totalorder %s21, 3
      %p149 = por %p147, %p148
      %p150 = scmp.ne.s32.totalorder %s141, %s142
      %p151 = scmp.eq.s32.totalorder %s21, 0
      %p152 = por %p150, %p151
      %p153 = scmp.ne.s32.totalorder %s141, %s142
      %p154 = scmp.eq.s32.totalorder %s22, 3
      %p155 = por %p153, %p154
      %p157 = scmp.ne.s32.totalorder %s142, %s156
      %p158 = scmp.eq.s32.totalorder %s22, 0
      %p159 = por %p157, %p158
      %s161 = sadd.s32 %s160, 1
      %p164 = scmp.eq.s32.totalorder %s16, 3
      %p165 = scmp.ne.s32.totalorder %s160, %s162
      %p166 = scmp.eq.s32.totalorder %s16, 0
      %p167 = por %p165, %p166
      %p168 = scmp.ne.s32.totalorder %s160, %s162
      %p169 = scmp.eq.s32.totalorder %s21, 3
      %p170 = por %p168, %p169
      %p171 = scmp.ne.s32.totalorder %s162, %s163
      %p172 = scmp.eq.s32.totalorder %s21, 0
      %p173 = por %p171, %p172
      %p174 = scmp.ne.s32.totalorder %s162, %s163
      %p175 = scmp.eq.s32.totalorder %s22, 3
      %p176 = por %p174, %p175
      %p178 = scmp.ne.s32.totalorder %s163, %s177
      %p179 = scmp.eq.s32.totalorder %s22, 0
      %p180 = por %p178, %p179
      %s181 = ssub.s32 %s16, %s23
      %p182 = scmp.eq.s32.totalorder %s181, 0
      %s184 = sadd.s32 %s183, 1
      %s185 = scalar_select %p182, %s183, %s184
      %p188 = pneg %p182
      %p189 = scmp.eq.s32.totalorder %s16, 3
      %p190 = por %p188, %p189
      %p191 = scmp.ne.s32.totalorder %s183, %s186
      %p192 = scmp.eq.s32.totalorder %s16, 0
      %p193 = por %p191, %p192
      %p194 = scmp.ne.s32.totalorder %s183, %s186
      %p195 = scmp.eq.s32.totalorder %s21, 3
      %p196 = por %p194, %p195
      %p197 = scmp.ne.s32.totalorder %s186, %s187
      %p198 = scmp.eq.s32.totalorder %s21, 0
      %p199 = por %p197, %p198
      %p200 = scmp.ne.s32.totalorder %s186, %s187
      %p201 = scmp.eq.s32.totalorder %s22, 3
      %p202 = por %p200, %p201
      %p204 = scmp.ne.s32.totalorder %s187, %s203
      %p205 = scmp.eq.s32.totalorder %s22, 0
      %p206 = por %p204, %p205
      %p207 = scmp.le.s32.totalorder 1, %s16
      %p208 = scmp.lt.s32.totalorder %s16, 5
      %p209 = pnand %p207, %p208
      %p210 = pneg %p209
      // Predicated region
      $region9: #{fp_forward.1} parent=5 // pred_check
        _
      $region10: #{fp_forward.1} parent=5 // pred_check_branch
        %212 = sbr.rel (%p209) target = $region12
      $region11: #{fp_forward.1} parent=5 // pred_region
        %s213 = ssub.s32 %s16, 1
        // Predicated region
        $region13: #{fp_forward.1} parent=11 // pred_check
          %p214 = pneg %p89
        $region14: #{fp_forward.1} parent=11 // pred_check_branch
          %216 = sbr.rel (%p214) target = $region16
        $region15: #{fp_forward.1} parent=11 // pred_region
          _
        $region16: #{fp_forward.1} parent=11 // pred_fallthru
          _
        // Predicated region
        $region17: #{fp_forward.1} parent=11 // pred_check
          %p217 = pneg %p110
        $region18: #{fp_forward.1} parent=11 // pred_check_branch
          %219 = sbr.rel (%p217) target = $region20
        $region19: #{fp_forward.1} parent=11 // pred_region
          _
        $region20: #{fp_forward.1} parent=11 // pred_fallthru
          _
        // Predicated region
        $region21: #{fp_forward.1} parent=11 // pred_check
          %p220 = pneg %p131
        $region22: #{fp_forward.1} parent=11 // pred_check_branch
          %222 = sbr.rel (%p220) target = $region24
        $region23: #{fp_forward.1} parent=11 // pred_region
          _
        $region24: #{fp_forward.1} parent=11 // pred_fallthru
          _
        // Predicated region
        $region25: #{fp_forward.1} parent=11 // pred_check
          %p223 = pneg %p152
        $region26: #{fp_forward.1} parent=11 // pred_check_branch
          %225 = sbr.rel (%p223) target = $region28
        $region27: #{fp_forward.1} parent=11 // pred_region
          _
        $region28: #{fp_forward.1} parent=11 // pred_fallthru
          _
        // Predicated region
        $region29: #{fp_forward.1} parent=11 // pred_check
          %p226 = pneg %p173
        $region30: #{fp_forward.1} parent=11 // pred_check_branch
          %228 = sbr.rel (%p226) target = $region32
        $region31: #{fp_forward.1} parent=11 // pred_region
          _
        $region32: #{fp_forward.1} parent=11 // pred_fallthru
          _
      $region12: #{fp_forward.1} parent=5 // pred_fallthru
        _
      %p229 = scmp.lt.s32.totalorder %s16, 4
      // Predicated region
      $region33: #{fp_forward.1} parent=5 // pred_check
        %p230 = pneg %p229
      $region34: #{fp_forward.1} parent=5 // pred_check_branch
        %232 = sbr.rel (%p230) target = $region36
      $region35: #{fp_forward.1} parent=5 // pred_region
        // Predicated region
        $region37: #{fp_forward.1} parent=35 // pred_check
          %p233 = pneg %p36
        $region38: #{fp_forward.1} parent=35 // pred_check_branch
          %235 = sbr.rel (%p233) target = $region40
        $region39: #{fp_forward.1} parent=35 // pred_region
          %s236 = smul.u32 32, %s16
          %p237 = scmp.lt.s32.totalorder %s236, 127
          %s238 = scalar_select %p237, %s236, 127
          %s239 = smul.addr %s238, 4
          %s240 = scalar_lea.vmem %s0, %s239
          %s241 = smul.u32 32, %s16
        $region40: #{fp_forward.1} parent=35 // pred_fallthru
          _
        // Predicated region
        $region41: #{fp_forward.1} parent=35 // pred_check
          %p242 = pneg %p62
        $region42: #{fp_forward.1} parent=35 // pred_check_branch
          %244 = sbr.rel (%p242) target = $region44
        $region43: #{fp_forward.1} parent=35 // pred_region
          %s245 = smul.u32 32, %s16
          %p246 = scmp.lt.s32.totalorder %s245, 127
          %s247 = scalar_select %p246, %s245, 127
          %s248 = smul.addr %s247, 4
          %s249 = scalar_lea.vmem %s1, %s248
          %s250 = smul.u32 32, %s16
        $region44: #{fp_forward.1} parent=35 // pred_fallthru
          _
      $region36: #{fp_forward.1} parent=5 // pred_fallthru
        _
      %p251 = scmp.le.s32.totalorder 1, %s16
      %p252 = scmp.lt.s32.totalorder %s16, 5
      %p253 = pnand %p251, %p252
      %p254 = pneg %p253
      // Predicated region
      $region45: #{fp_forward.1} parent=5 // pred_check
        _
      $region46: #{fp_forward.1} parent=5 // pred_check_branch
        %256 = sbr.rel (%p253) target = $region48
      $region47: #{fp_forward.1} parent=5 // pred_region
        %s257 = ssub.s32 %s16, 1
        %s258 = smul.u32 32, %s21
        %p259 = scmp.lt.s32.totalorder %s258, 127
        %s260 = scalar_select %p259, %s258, 127
        %s261 = smul.addr %s260, 4
        %s262 = scalar_lea.vmem %s0, %s261
        %p263 = pneg %p42
        %p264 = pneg %p39
        %s265 = smul.u32 32, %s21
        %p266 = scmp.lt.s32.totalorder %s265, 127
        %s267 = scalar_select %p266, %s265, 127
        %s268 = smul.addr %s267, 4
        %s269 = scalar_lea.vmem %s1, %s268
        %p270 = pneg %p68
        %p271 = pneg %p65
        %p272 = pneg %p89
        %p273 = pneg %p86
        %p274 = pneg %p110
        %p275 = pneg %p107
        %p276 = pneg %p131
        %p277 = pneg %p128
        %p278 = pneg %p152
        %p279 = pneg %p149
        %p280 = pneg %p173
        %p281 = pneg %p170
        %p282 = pneg %p199
        %p283 = pneg %p196
        %s284 = sand.u32 %s186, 1
        %s285 = scalar_lea.sflag [#allocation3], %s284
        %s286 = sand.u32 %s186, 1
        %s287 = smul.addr %s286, 256
        %s288 = scalar_lea.vmem [#allocation2], %s287
        %s289 = smul.u32 32, %s21
        %p290 = scmp.lt.s32.totalorder %s289, 127
        %s291 = scalar_select %p290, %s289, 127
        %s292 = smul.addr %s291, 4
        %s293 = scalar_lea.vmem %s0, %s292
        %s294 = smul.u32 32, %s21
        %s295 = smul.u32 32, %s21
        %p296 = scmp.lt.s32.totalorder %s295, 127
        %s297 = scalar_select %p296, %s295, 127
        %s298 = smul.addr %s297, 4
        %s299 = scalar_lea.vmem %s1, %s298
        %s300 = smul.u32 32, %s21
        %s301 = smul.u32 32, %s21
        %v303 = vld [vmem:[%s293] sm:$0xf]
        %v304 = vld [vmem:[%s293 + $0x4] sm:$0xf]
        %v305 = vld [vmem:[%s293 + $0x8] sm:$0xf]
        %v306 = vld [vmem:[%s293 + $0xc] sm:$0xf]
        %v307 = vld [vmem:[%s293 + $0x10] sm:$0xf]
        %v308 = vld [vmem:[%s293 + $0x14] sm:$0xf]
        %v309 = vld [vmem:[%s293 + $0x18] sm:$0xf]
        %v310 = vld [vmem:[%s293 + $0x1c] sm:$0xf]
        %v311 = vld [vmem:[%s293 + $0x20] sm:$0xf]
        %v312 = vld [vmem:[%s293 + $0x24] sm:$0xf]
        %v313 = vld [vmem:[%s293 + $0x28] sm:$0xf]
        %v314 = vld [vmem:[%s293 + $0x2c] sm:$0xf]
        %v315 = vld [vmem:[%s293 + $0x30] sm:$0xf]
        %v316 = vld [vmem:[%s293 + $0x34] sm:$0xf]
        %v317 = vld [vmem:[%s293 + $0x38] sm:$0xf]
        %v318 = vld [vmem:[%s293 + $0x3c] sm:$0xf]
        %v319 = vld [vmem:[%s293 + $0x40] sm:$0xf]
        %v320 = vld [vmem:[%s293 + $0x44] sm:$0xf]
        %v321 = vld [vmem:[%s293 + $0x48] sm:$0xf]
        %v322 = vld [vmem:[%s293 + $0x4c] sm:$0xf]
        %v323 = vld [vmem:[%s293 + $0x50] sm:$0xf]
        %v324 = vld [vmem:[%s293 + $0x54] sm:$0xf]
        %v325 = vld [vmem:[%s293 + $0x58] sm:$0xf]
        %v326 = vld [vmem:[%s293 + $0x5c] sm:$0xf]
        %v327 = vld [vmem:[%s293 + $0x60] sm:$0xf]
        %v328 = vld [vmem:[%s293 + $0x64] sm:$0xf]
        %v329 = vld [vmem:[%s293 + $0x68] sm:$0xf]
        %v330 = vld [vmem:[%s293 + $0x6c] sm:$0xf]
        %v331 = vld [vmem:[%s293 + $0x70] sm:$0xf]
        %v332 = vld [vmem:[%s293 + $0x74] sm:$0xf]
        %v333 = vld [vmem:[%s293 + $0x78] sm:$0xf]
        %v334 = vld [vmem:[%s293 + $0x7c] sm:$0xf]
        %v335 = vld [vmem:[%s2] sm:$0xff]
        %v336 = vld [vmem:[%s2 + $0x8] sm:$0xff]
        %v337 = vld [vmem:[%s2 + $0x10] sm:$0xff]
        %v338 = vld [vmem:[%s2 + $0x18] sm:$0xff]
        %v339 = vld [vmem:[%s2 + $0x20] sm:$0xff]
        %v340 = vld [vmem:[%s2 + $0x28] sm:$0xff]
        %v341 = vld [vmem:[%s2 + $0x30] sm:$0xff]
        %v342 = vld [vmem:[%s2 + $0x38] sm:$0xff]
        %v343 = vld [vmem:[%s2 + $0x40] sm:$0xff]
        %v344 = vld [vmem:[%s2 + $0x48] sm:$0xff]
        %v345 = vld [vmem:[%s2 + $0x50] sm:$0xff]
        %v346 = vld [vmem:[%s2 + $0x58] sm:$0xff]
        %v347 = vld [vmem:[%s2 + $0x60] sm:$0xff]
        %v348 = vld [vmem:[%s2 + $0x68] sm:$0xff]
        %v349 = vld [vmem:[%s2 + $0x70] sm:$0xff]
        %v350 = vld [vmem:[%s2 + $0x78] sm:$0xff]
        %v351 = vld [vmem:[%s299] sm:$0xf]
        %v352 = vld [vmem:[%s299 + $0x4] sm:$0xf]
        %v353 = vld [vmem:[%s299 + $0x8] sm:$0xf]
        %v354 = vld [vmem:[%s299 + $0xc] sm:$0xf]
        %v355 = vld [vmem:[%s299 + $0x10] sm:$0xf]
        %v356 = vld [vmem:[%s299 + $0x14] sm:$0xf]
        %v357 = vld [vmem:[%s299 + $0x18] sm:$0xf]
        %v358 = vld [vmem:[%s299 + $0x1c] sm:$0xf]
        %v359 = vld [vmem:[%s299 + $0x20] sm:$0xf]
        %v360 = vld [vmem:[%s299 + $0x24] sm:$0xf]
        %v361 = vld [vmem:[%s299 + $0x28] sm:$0xf]
        %v362 = vld [vmem:[%s299 + $0x2c] sm:$0xf]
        %v363 = vld [vmem:[%s299 + $0x30] sm:$0xf]
        %v364 = vld [vmem:[%s299 + $0x34] sm:$0xf]
        %v365 = vld [vmem:[%s299 + $0x38] sm:$0xf]
        %v366 = vld [vmem:[%s299 + $0x3c] sm:$0xf]
        %v367 = vld [vmem:[%s299 + $0x40] sm:$0xf]
        %v368 = vld [vmem:[%s299 + $0x44] sm:$0xf]
        %v369 = vld [vmem:[%s299 + $0x48] sm:$0xf]
        %v370 = vld [vmem:[%s299 + $0x4c] sm:$0xf]
        %v371 = vld [vmem:[%s299 + $0x50] sm:$0xf]
        %v372 = vld [vmem:[%s299 + $0x54] sm:$0xf]
        %v373 = vld [vmem:[%s299 + $0x58] sm:$0xf]
        %v374 = vld [vmem:[%s299 + $0x5c] sm:$0xf]
        %v375 = vld [vmem:[%s299 + $0x60] sm:$0xf]
        %v376 = vld [vmem:[%s299 + $0x64] sm:$0xf]
        %v377 = vld [vmem:[%s299 + $0x68] sm:$0xf]
        %v378 = vld [vmem:[%s299 + $0x6c] sm:$0xf]
        %v379 = vld [vmem:[%s299 + $0x70] sm:$0xf]
        %v380 = vld [vmem:[%s299 + $0x74] sm:$0xf]
        %v381 = vld [vmem:[%s299 + $0x78] sm:$0xf]
        %v382 = vld [vmem:[%s299 + $0x7c] sm:$0xf]
        %v383 = vld [vmem:[%s3] sm:$0xff]
        %v384 = vld [vmem:[%s3 + $0x8] sm:$0xff]
        %v385 = vld [vmem:[%s3 + $0x10] sm:$0xff]
        %v386 = vld [vmem:[%s3 + $0x18] sm:$0xff]
        %v387 = vld [vmem:[%s3 + $0x20] sm:$0xff]
        %v388 = vld [vmem:[%s3 + $0x28] sm:$0xff]
        %v389 = vld [vmem:[%s3 + $0x30] sm:$0xff]
        %v390 = vld [vmem:[%s3 + $0x38] sm:$0xff]
        %v423 = vunpack.c.l.b16 %v351
        %v424 = vunpack.c.l.b16 %v352
        %v425 = vunpack.c.l.b16 %v353
        %v426 = vunpack.c.l.b16 %v354
        %v427 = vunpack.c.l.b16 %v355
        %v428 = vunpack.c.l.b16 %v356
        %v429 = vunpack.c.l.b16 %v357
        %v430 = vunpack.c.l.b16 %v358
        %v431 = vunpack.c.l.b16 %v359
        %v432 = vunpack.c.l.b16 %v360
        %v433 = vunpack.c.l.b16 %v361
        %v434 = vunpack.c.l.b16 %v362
        %v435 = vunpack.c.l.b16 %v363
        %v436 = vunpack.c.l.b16 %v364
        %v437 = vunpack.c.l.b16 %v365
        %v438 = vunpack.c.l.b16 %v366
        %v439 = vunpack.c.l.b16 %v367
        %v440 = vunpack.c.l.b16 %v368
        %v441 = vunpack.c.l.b16 %v369
        %v442 = vunpack.c.l.b16 %v370
        %v443 = vunpack.c.l.b16 %v371
        %v444 = vunpack.c.l.b16 %v372
        %v445 = vunpack.c.l.b16 %v373
        %v446 = vunpack.c.l.b16 %v374
        %v447 = vunpack.c.l.b16 %v375
        %v448 = vunpack.c.l.b16 %v376
        %v449 = vunpack.c.l.b16 %v377
        %v450 = vunpack.c.l.b16 %v378
        %v451 = vunpack.c.l.b16 %v379
        %v452 = vunpack.c.l.b16 %v380
        %v453 = vunpack.c.l.b16 %v381
        %v454 = vunpack.c.l.b16 %v382
        %v455 = vpack.c.b16 %v424, %v423
        %v456 = vpack.c.b16 %v426, %v425
        %v457 = vpack.c.b16 %v428, %v427
        %v458 = vpack.c.b16 %v430, %v429
        %v459 = vpack.c.b16 %v432, %v431
        %v460 = vpack.c.b16 %v434, %v433
        %v461 = vpack.c.b16 %v436, %v435
        %v462 = vpack.c.b16 %v438, %v437
        %v463 = vpack.c.b16 %v440, %v439
        %v464 = vpack.c.b16 %v442, %v441
        %v465 = vpack.c.b16 %v444, %v443
        %v466 = vpack.c.b16 %v446, %v445
        %v467 = vpack.c.b16 %v448, %v447
        %v468 = vpack.c.b16 %v450, %v449
        %v469 = vpack.c.b16 %v452, %v451
        %v470 = vpack.c.b16 %v454, %v453
        %v479 = vunpack.c.l.b16 %v383
        %v480 = vunpack.c.h.b16 %v383
        %v481 = vunpack.c.l.b16 %v384
        %v482 = vunpack.c.h.b16 %v384
        %v483 = vunpack.c.l.b16 %v385
        %v484 = vunpack.c.h.b16 %v385
        %v485 = vunpack.c.l.b16 %v386
        %v486 = vunpack.c.h.b16 %v386
        %v487 = vunpack.c.l.b16 %v387
        %v488 = vunpack.c.h.b16 %v387
        %v489 = vunpack.c.l.b16 %v388
        %v490 = vunpack.c.h.b16 %v388
        %v491 = vunpack.c.l.b16 %v389
        %v492 = vunpack.c.h.b16 %v389
        %v493 = vunpack.c.l.b16 %v390
        %v494 = vunpack.c.h.b16 %v390
        %v495 = vpack.c.b16 %v481, %v479
        %v496 = vpack.c.b16 %v482, %v480
        %v497 = vpack.c.b16 %v485, %v483
        %v498 = vpack.c.b16 %v486, %v484
        %v499 = vpack.c.b16 %v489, %v487
        %v500 = vpack.c.b16 %v490, %v488
        %v501 = vpack.c.b16 %v493, %v491
        %v502 = vpack.c.b16 %v494, %v492
        %vm511 = vcmask 523264
        %v513 = vsel %vm511, %v455, 0
        %v516 = vsel %vm511, %v456, 0
        %v519 = vsel %vm511, %v457, 0
        %v522 = vsel %vm511, %v458, 0
        %v525 = vsel %vm511, %v459, 0
        %v528 = vsel %vm511, %v460, 0
        %v531 = vsel %vm511, %v461, 0
        %v534 = vsel %vm511, %v462, 0
        %v537 = vsel %vm511, %v463, 0
        %v540 = vsel %vm511, %v464, 0
        %v543 = vsel %vm511, %v465, 0
        %v546 = vsel %vm511, %v466, 0
        %v549 = vsel %vm511, %v467, 0
        %v552 = vsel %vm511, %v468, 0
        %v555 = vsel %vm511, %v469, 0
        %v558 = vsel %vm511, %v470, 0
        %560 = vmatpush.bf16.msra.mxu0 0
        %561 = vmatpush.bf16.msra.mxu0 0
        %562 = vmatpush.bf16.msra.mxu0 0
        %563 = vmatpush.bf16.msra.mxu0 0
        %564 = vmatpush.bf16.msra.mxu0 %v501
        %565 = vmatpush.bf16.msra.mxu0 %v499
        %566 = vmatpush.bf16.msra.mxu0 %v497
        %567 = vmatpush.bf16.msra.mxu0 %v495
        %568 = vmatmul.bf16.gmra.mxu0 %v513
        %v569 = vpop.f32.mrf.mxu0
        %v570 = vadd.f32 0.0, %v569
        %v571 = vpop.f32.mrf.mxu0
        %v572 = vadd.f32 0.0, %v571
        %573 = vmatmul.bf16.gmra.mxu0 %v516
        %v574 = vpop.f32.mrf.mxu0
        %v575 = vadd.f32 0.0, %v574
        %v576 = vpop.f32.mrf.mxu0
        %v577 = vadd.f32 0.0, %v576
        %578 = vmatmul.bf16.gmra.mxu0 %v519
        %v579 = vpop.f32.mrf.mxu0
        %v580 = vadd.f32 0.0, %v579
        %v581 = vpop.f32.mrf.mxu0
        %v582 = vadd.f32 0.0, %v581
        %583 = vmatmul.bf16.gmra.mxu0 %v522
        %v584 = vpop.f32.mrf.mxu0
        %v585 = vadd.f32 0.0, %v584
        %v586 = vpop.f32.mrf.mxu0
        %v587 = vadd.f32 0.0, %v586
        %588 = vmatmul.bf16.gmra.mxu0 %v525
        %v589 = vpop.f32.mrf.mxu0
        %v590 = vadd.f32 0.0, %v589
        %v591 = vpop.f32.mrf.mxu0
        %v592 = vadd.f32 0.0, %v591
        %593 = vmatmul.bf16.gmra.mxu0 %v528
        %v594 = vpop.f32.mrf.mxu0
        %v595 = vadd.f32 0.0, %v594
        %v596 = vpop.f32.mrf.mxu0
        %v597 = vadd.f32 0.0, %v596
        %598 = vmatmul.bf16.gmra.mxu0 %v531
        %v599 = vpop.f32.mrf.mxu0
        %v600 = vadd.f32 0.0, %v599
        %v601 = vpop.f32.mrf.mxu0
        %v602 = vadd.f32 0.0, %v601
        %603 = vmatmul.bf16.gmra.mxu0 %v534
        %v604 = vpop.f32.mrf.mxu0
        %v605 = vadd.f32 0.0, %v604
        %v606 = vpop.f32.mrf.mxu0
        %v607 = vadd.f32 0.0, %v606
        %608 = vmatmul.bf16.gmra.mxu0 %v537
        %v609 = vpop.f32.mrf.mxu0
        %v610 = vadd.f32 0.0, %v609
        %v611 = vpop.f32.mrf.mxu0
        %v612 = vadd.f32 0.0, %v611
        %613 = vmatmul.bf16.gmra.mxu0 %v540
        %v614 = vpop.f32.mrf.mxu0
        %v615 = vadd.f32 0.0, %v614
        %v616 = vpop.f32.mrf.mxu0
        %v617 = vadd.f32 0.0, %v616
        %618 = vmatmul.bf16.gmra.mxu0 %v543
        %v619 = vpop.f32.mrf.mxu0
        %v620 = vadd.f32 0.0, %v619
        %v621 = vpop.f32.mrf.mxu0
        %v622 = vadd.f32 0.0, %v621
        %623 = vmatmul.bf16.gmra.mxu0 %v546
        %v624 = vpop.f32.mrf.mxu0
        %v625 = vadd.f32 0.0, %v624
        %v626 = vpop.f32.mrf.mxu0
        %v627 = vadd.f32 0.0, %v626
        %628 = vmatmul.bf16.gmra.mxu0 %v549
        %v629 = vpop.f32.mrf.mxu0
        %v630 = vadd.f32 0.0, %v629
        %v631 = vpop.f32.mrf.mxu0
        %v632 = vadd.f32 0.0, %v631
        %633 = vmatmul.bf16.gmra.mxu0 %v552
        %v634 = vpop.f32.mrf.mxu0
        %v635 = vadd.f32 0.0, %v634
        %v636 = vpop.f32.mrf.mxu0
        %v637 = vadd.f32 0.0, %v636
        %638 = vmatmul.bf16.gmra.mxu0 %v555
        %v639 = vpop.f32.mrf.mxu0
        %v640 = vadd.f32 0.0, %v639
        %v641 = vpop.f32.mrf.mxu0
        %v642 = vadd.f32 0.0, %v641
        %643 = vmatmul.bf16.gmra.mxu0 %v558
        %v644 = vpop.f32.mrf.mxu0
        %v645 = vadd.f32 0.0, %v644
        %v646 = vpop.f32.mrf.mxu0
        %v647 = vadd.f32 0.0, %v646
        %648 = vdwg.mxu0
        %649 = vmatpush.bf16.msra.mxu0 0
        %650 = vmatpush.bf16.msra.mxu0 0
        %651 = vmatpush.bf16.msra.mxu0 0
        %652 = vmatpush.bf16.msra.mxu0 0
        %653 = vmatpush.bf16.msra.mxu0 %v502
        %654 = vmatpush.bf16.msra.mxu0 %v500
        %655 = vmatpush.bf16.msra.mxu0 %v498
        %656 = vmatpush.bf16.msra.mxu0 %v496
        %657 = vmatmul.bf16.gmra.mxu0 %v513
        %v658 = vpop.f32.mrf.mxu0
        %v659 = vadd.f32 0.0, %v658
        %v660 = vpop.f32.mrf.mxu0
        %v661 = vadd.f32 0.0, %v660
        %662 = vmatmul.bf16.gmra.mxu0 %v516
        %v663 = vpop.f32.mrf.mxu0
        %v664 = vadd.f32 0.0, %v663
        %v665 = vpop.f32.mrf.mxu0
        %v666 = vadd.f32 0.0, %v665
        %667 = vmatmul.bf16.gmra.mxu0 %v519
        %v668 = vpop.f32.mrf.mxu0
        %v669 = vadd.f32 0.0, %v668
        %v670 = vpop.f32.mrf.mxu0
        %v671 = vadd.f32 0.0, %v670
        %672 = vmatmul.bf16.gmra.mxu0 %v522
        %v673 = vpop.f32.mrf.mxu0
        %v674 = vadd.f32 0.0, %v673
        %v675 = vpop.f32.mrf.mxu0
        %v676 = vadd.f32 0.0, %v675
        %677 = vmatmul.bf16.gmra.mxu0 %v525
        %v678 = vpop.f32.mrf.mxu0
        %v679 = vadd.f32 0.0, %v678
        %v680 = vpop.f32.mrf.mxu0
        %v681 = vadd.f32 0.0, %v680
        %682 = vmatmul.bf16.gmra.mxu0 %v528
        %v683 = vpop.f32.mrf.mxu0
        %v684 = vadd.f32 0.0, %v683
        %v685 = vpop.f32.mrf.mxu0
        %v686 = vadd.f32 0.0, %v685
        %687 = vmatmul.bf16.gmra.mxu0 %v531
        %v688 = vpop.f32.mrf.mxu0
        %v689 = vadd.f32 0.0, %v688
        %v690 = vpop.f32.mrf.mxu0
        %v691 = vadd.f32 0.0, %v690
        %692 = vmatmul.bf16.gmra.mxu0 %v534
        %v693 = vpop.f32.mrf.mxu0
        %v694 = vadd.f32 0.0, %v693
        %v695 = vpop.f32.mrf.mxu0
        %v696 = vadd.f32 0.0, %v695
        %697 = vmatmul.bf16.gmra.mxu0 %v537
        %v698 = vpop.f32.mrf.mxu0
        %v699 = vadd.f32 0.0, %v698
        %v700 = vpop.f32.mrf.mxu0
        %v701 = vadd.f32 0.0, %v700
        %702 = vmatmul.bf16.gmra.mxu0 %v540
        %v703 = vpop.f32.mrf.mxu0
        %v704 = vadd.f32 0.0, %v703
        %v705 = vpop.f32.mrf.mxu0
        %v706 = vadd.f32 0.0, %v705
        %707 = vmatmul.bf16.gmra.mxu0 %v543
        %v708 = vpop.f32.mrf.mxu0
        %v709 = vadd.f32 0.0, %v708
        %v710 = vpop.f32.mrf.mxu0
        %v711 = vadd.f32 0.0, %v710
        %712 = vmatmul.bf16.gmra.mxu0 %v546
        %v713 = vpop.f32.mrf.mxu0
        %v714 = vadd.f32 0.0, %v713
        %v715 = vpop.f32.mrf.mxu0
        %v716 = vadd.f32 0.0, %v715
        %717 = vmatmul.bf16.gmra.mxu0 %v549
        %v718 = vpop.f32.mrf.mxu0
        %v719 = vadd.f32 0.0, %v718
        %v720 = vpop.f32.mrf.mxu0
        %v721 = vadd.f32 0.0, %v720
        %722 = vmatmul.bf16.gmra.mxu0 %v552
        %v723 = vpop.f32.mrf.mxu0
        %v724 = vadd.f32 0.0, %v723
        %v725 = vpop.f32.mrf.mxu0
        %v726 = vadd.f32 0.0, %v725
        %727 = vmatmul.bf16.gmra.mxu0 %v555
        %v728 = vpop.f32.mrf.mxu0
        %v729 = vadd.f32 0.0, %v728
        %v730 = vpop.f32.mrf.mxu0
        %v731 = vadd.f32 0.0, %v730
        %732 = vmatmul.bf16.gmra.mxu0 %v558
        %v733 = vpop.f32.mrf.mxu0
        %v734 = vadd.f32 0.0, %v733
        %v735 = vpop.f32.mrf.mxu0
        %v736 = vadd.f32 0.0, %v735
        %737 = vdwg.mxu0
        %v770 = vunpack.c.l.b16 %v303
        %v771 = vunpack.c.l.b16 %v304
        %v772 = vunpack.c.l.b16 %v305
        %v773 = vunpack.c.l.b16 %v306
        %v774 = vunpack.c.l.b16 %v307
        %v775 = vunpack.c.l.b16 %v308
        %v776 = vunpack.c.l.b16 %v309
        %v777 = vunpack.c.l.b16 %v310
        %v778 = vunpack.c.l.b16 %v311
        %v779 = vunpack.c.l.b16 %v312
        %v780 = vunpack.c.l.b16 %v313
        %v781 = vunpack.c.l.b16 %v314
        %v782 = vunpack.c.l.b16 %v315
        %v783 = vunpack.c.l.b16 %v316
        %v784 = vunpack.c.l.b16 %v317
        %v785 = vunpack.c.l.b16 %v318
        %v786 = vunpack.c.l.b16 %v319
        %v787 = vunpack.c.l.b16 %v320
        %v788 = vunpack.c.l.b16 %v321
        %v789 = vunpack.c.l.b16 %v322
        %v790 = vunpack.c.l.b16 %v323
        %v791 = vunpack.c.l.b16 %v324
        %v792 = vunpack.c.l.b16 %v325
        %v793 = vunpack.c.l.b16 %v326
        %v794 = vunpack.c.l.b16 %v327
        %v795 = vunpack.c.l.b16 %v328
        %v796 = vunpack.c.l.b16 %v329
        %v797 = vunpack.c.l.b16 %v330
        %v798 = vunpack.c.l.b16 %v331
        %v799 = vunpack.c.l.b16 %v332
        %v800 = vunpack.c.l.b16 %v333
        %v801 = vunpack.c.l.b16 %v334
        %v802 = vpack.c.b16 %v771, %v770
        %v803 = vpack.c.b16 %v773, %v772
        %v804 = vpack.c.b16 %v775, %v774
        %v805 = vpack.c.b16 %v777, %v776
        %v806 = vpack.c.b16 %v779, %v778
        %v807 = vpack.c.b16 %v781, %v780
        %v808 = vpack.c.b16 %v783, %v782
        %v809 = vpack.c.b16 %v785, %v784
        %v810 = vpack.c.b16 %v787, %v786
        %v811 = vpack.c.b16 %v789, %v788
        %v812 = vpack.c.b16 %v791, %v790
        %v813 = vpack.c.b16 %v793, %v792
        %v814 = vpack.c.b16 %v795, %v794
        %v815 = vpack.c.b16 %v797, %v796
        %v816 = vpack.c.b16 %v799, %v798
        %v817 = vpack.c.b16 %v801, %v800
        %v850 = vunpack.c.l.b16 %v335
        %v851 = vunpack.c.h.b16 %v335
        %v852 = vunpack.c.l.b16 %v336
        %v853 = vunpack.c.h.b16 %v336
        %v854 = vunpack.c.l.b16 %v337
        %v855 = vunpack.c.h.b16 %v337
        %v856 = vunpack.c.l.b16 %v338
        %v857 = vunpack.c.h.b16 %v338
        %v858 = vunpack.c.l.b16 %v339
        %v859 = vunpack.c.h.b16 %v339
        %v860 = vunpack.c.l.b16 %v340
        %v861 = vunpack.c.h.b16 %v340
        %v862 = vunpack.c.l.b16 %v341
        %v863 = vunpack.c.h.b16 %v341
        %v864 = vunpack.c.l.b16 %v342
        %v865 = vunpack.c.h.b16 %v342
        %v866 = vunpack.c.l.b16 %v343
        %v867 = vunpack.c.h.b16 %v343
        %v868 = vunpack.c.l.b16 %v344
        %v869 = vunpack.c.h.b16 %v344
        %v870 = vunpack.c.l.b16 %v345
        %v871 = vunpack.c.h.b16 %v345
        %v872 = vunpack.c.l.b16 %v346
        %v873 = vunpack.c.h.b16 %v346
        %v874 = vunpack.c.l.b16 %v347
        %v875 = vunpack.c.h.b16 %v347
        %v876 = vunpack.c.l.b16 %v348
        %v877 = vunpack.c.h.b16 %v348
        %v878 = vunpack.c.l.b16 %v349
        %v879 = vunpack.c.h.b16 %v349
        %v880 = vunpack.c.l.b16 %v350
        %v881 = vunpack.c.h.b16 %v350
        %v882 = vpack.c.b16 %v852, %v850
        %v883 = vpack.c.b16 %v853, %v851
        %v884 = vpack.c.b16 %v856, %v854
        %v885 = vpack.c.b16 %v857, %v855
        %v886 = vpack.c.b16 %v860, %v858
        %v887 = vpack.c.b16 %v861, %v859
        %v888 = vpack.c.b16 %v864, %v862
        %v889 = vpack.c.b16 %v865, %v863
        %v890 = vpack.c.b16 %v868, %v866
        %v891 = vpack.c.b16 %v869, %v867
        %v892 = vpack.c.b16 %v872, %v870
        %v893 = vpack.c.b16 %v873, %v871
        %v894 = vpack.c.b16 %v876, %v874
        %v895 = vpack.c.b16 %v877, %v875
        %v896 = vpack.c.b16 %v880, %v878
        %v897 = vpack.c.b16 %v881, %v879
        %914 = vmatpush.bf16.msra.mxu0 %v896
        %915 = vmatpush.bf16.msra.mxu0 %v894
        %916 = vmatpush.bf16.msra.mxu0 %v892
        %917 = vmatpush.bf16.msra.mxu0 %v890
        %918 = vmatpush.bf16.msra.mxu0 %v888
        %919 = vmatpush.bf16.msra.mxu0 %v886
        %920 = vmatpush.bf16.msra.mxu0 %v884
        %921 = vmatpush.bf16.msra.mxu0 %v882
        %922 = vmatmul.bf16.gmra.mxu0 %v802
        %v923 = vpop.f32.mrf.mxu0
        %v924 = vadd.f32 %v570, %v923
        %v925 = vpop.f32.mrf.mxu0
        %v926 = vadd.f32 %v572, %v925
        %927 = vmatmul.bf16.gmra.mxu0 %v803
        %v928 = vpop.f32.mrf.mxu0
        %v929 = vadd.f32 %v575, %v928
        %v930 = vpop.f32.mrf.mxu0
        %v931 = vadd.f32 %v577, %v930
        %932 = vmatmul.bf16.gmra.mxu0 %v804
        %v933 = vpop.f32.mrf.mxu0
        %v934 = vadd.f32 %v580, %v933
        %v935 = vpop.f32.mrf.mxu0
        %v936 = vadd.f32 %v582, %v935
        %937 = vmatmul.bf16.gmra.mxu0 %v805
        %v938 = vpop.f32.mrf.mxu0
        %v939 = vadd.f32 %v585, %v938
        %v940 = vpop.f32.mrf.mxu0
        %v941 = vadd.f32 %v587, %v940
        %942 = vmatmul.bf16.gmra.mxu0 %v806
        %v943 = vpop.f32.mrf.mxu0
        %v944 = vadd.f32 %v590, %v943
        %v945 = vpop.f32.mrf.mxu0
        %v946 = vadd.f32 %v592, %v945
        %947 = vmatmul.bf16.gmra.mxu0 %v807
        %v948 = vpop.f32.mrf.mxu0
        %v949 = vadd.f32 %v595, %v948
        %v950 = vpop.f32.mrf.mxu0
        %v951 = vadd.f32 %v597, %v950
        %952 = vmatmul.bf16.gmra.mxu0 %v808
        %v953 = vpop.f32.mrf.mxu0
        %v954 = vadd.f32 %v600, %v953
        %v955 = vpop.f32.mrf.mxu0
        %v956 = vadd.f32 %v602, %v955
        %957 = vmatmul.bf16.gmra.mxu0 %v809
        %v958 = vpop.f32.mrf.mxu0
        %v959 = vadd.f32 %v605, %v958
        %v960 = vpop.f32.mrf.mxu0
        %v961 = vadd.f32 %v607, %v960
        %962 = vmatmul.bf16.gmra.mxu0 %v810
        %v963 = vpop.f32.mrf.mxu0
        %v964 = vadd.f32 %v610, %v963
        %v965 = vpop.f32.mrf.mxu0
        %v966 = vadd.f32 %v612, %v965
        %967 = vmatmul.bf16.gmra.mxu0 %v811
        %v968 = vpop.f32.mrf.mxu0
        %v969 = vadd.f32 %v615, %v968
        %v970 = vpop.f32.mrf.mxu0
        %v971 = vadd.f32 %v617, %v970
        %972 = vmatmul.bf16.gmra.mxu0 %v812
        %v973 = vpop.f32.mrf.mxu0
        %v974 = vadd.f32 %v620, %v973
        %v975 = vpop.f32.mrf.mxu0
        %v976 = vadd.f32 %v622, %v975
        %977 = vmatmul.bf16.gmra.mxu0 %v813
        %v978 = vpop.f32.mrf.mxu0
        %v979 = vadd.f32 %v625, %v978
        %v980 = vpop.f32.mrf.mxu0
        %v981 = vadd.f32 %v627, %v980
        %982 = vmatmul.bf16.gmra.mxu0 %v814
        %v983 = vpop.f32.mrf.mxu0
        %v984 = vadd.f32 %v630, %v983
        %v985 = vpop.f32.mrf.mxu0
        %v986 = vadd.f32 %v632, %v985
        %987 = vmatmul.bf16.gmra.mxu0 %v815
        %v988 = vpop.f32.mrf.mxu0
        %v989 = vadd.f32 %v635, %v988
        %v990 = vpop.f32.mrf.mxu0
        %v991 = vadd.f32 %v637, %v990
        %992 = vmatmul.bf16.gmra.mxu0 %v816
        %v993 = vpop.f32.mrf.mxu0
        %v994 = vadd.f32 %v640, %v993
        %v995 = vpop.f32.mrf.mxu0
        %v996 = vadd.f32 %v642, %v995
        %997 = vmatmul.bf16.gmra.mxu0 %v817
        %v998 = vpop.f32.mrf.mxu0
        %v999 = vadd.f32 %v645, %v998
        %v1000 = vpop.f32.mrf.mxu0
        %v1001 = vadd.f32 %v647, %v1000
        %1002 = vdwg.mxu0
        %1003 = vmatpush.bf16.msra.mxu0 %v897
        %1004 = vmatpush.bf16.msra.mxu0 %v895
        %1005 = vmatpush.bf16.msra.mxu0 %v893
        %1006 = vmatpush.bf16.msra.mxu0 %v891
        %1007 = vmatpush.bf16.msra.mxu0 %v889
        %1008 = vmatpush.bf16.msra.mxu0 %v887
        %1009 = vmatpush.bf16.msra.mxu0 %v885
        %1010 = vmatpush.bf16.msra.mxu0 %v883
        %1011 = vmatmul.bf16.gmra.mxu0 %v802
        %v1012 = vpop.f32.mrf.mxu0
        %v1013 = vadd.f32 %v659, %v1012
        %v1014 = vpop.f32.mrf.mxu0
        %v1015 = vadd.f32 %v661, %v1014
        %1016 = vmatmul.bf16.gmra.mxu0 %v803
        %v1017 = vpop.f32.mrf.mxu0
        %v1018 = vadd.f32 %v664, %v1017
        %v1019 = vpop.f32.mrf.mxu0
        %v1020 = vadd.f32 %v666, %v1019
        %1021 = vmatmul.bf16.gmra.mxu0 %v804
        %v1022 = vpop.f32.mrf.mxu0
        %v1023 = vadd.f32 %v669, %v1022
        %v1024 = vpop.f32.mrf.mxu0
        %v1025 = vadd.f32 %v671, %v1024
        %1026 = vmatmul.bf16.gmra.mxu0 %v805
        %v1027 = vpop.f32.mrf.mxu0
        %v1028 = vadd.f32 %v674, %v1027
        %v1029 = vpop.f32.mrf.mxu0
        %v1030 = vadd.f32 %v676, %v1029
        %1031 = vmatmul.bf16.gmra.mxu0 %v806
        %v1032 = vpop.f32.mrf.mxu0
        %v1033 = vadd.f32 %v679, %v1032
        %v1034 = vpop.f32.mrf.mxu0
        %v1035 = vadd.f32 %v681, %v1034
        %1036 = vmatmul.bf16.gmra.mxu0 %v807
        %v1037 = vpop.f32.mrf.mxu0
        %v1038 = vadd.f32 %v684, %v1037
        %v1039 = vpop.f32.mrf.mxu0
        %v1040 = vadd.f32 %v686, %v1039
        %1041 = vmatmul.bf16.gmra.mxu0 %v808
        %v1042 = vpop.f32.mrf.mxu0
        %v1043 = vadd.f32 %v689, %v1042
        %v1044 = vpop.f32.mrf.mxu0
        %v1045 = vadd.f32 %v691, %v1044
        %1046 = vmatmul.bf16.gmra.mxu0 %v809
        %v1047 = vpop.f32.mrf.mxu0
        %v1048 = vadd.f32 %v694, %v1047
        %v1049 = vpop.f32.mrf.mxu0
        %v1050 = vadd.f32 %v696, %v1049
        %1051 = vmatmul.bf16.gmra.mxu0 %v810
        %v1052 = vpop.f32.mrf.mxu0
        %v1053 = vadd.f32 %v699, %v1052
        %v1054 = vpop.f32.mrf.mxu0
        %v1055 = vadd.f32 %v701, %v1054
        %1056 = vmatmul.bf16.gmra.mxu0 %v811
        %v1057 = vpop.f32.mrf.mxu0
        %v1058 = vadd.f32 %v704, %v1057
        %v1059 = vpop.f32.mrf.mxu0
        %v1060 = vadd.f32 %v706, %v1059
        %1061 = vmatmul.bf16.gmra.mxu0 %v812
        %v1062 = vpop.f32.mrf.mxu0
        %v1063 = vadd.f32 %v709, %v1062
        %v1064 = vpop.f32.mrf.mxu0
        %v1065 = vadd.f32 %v711, %v1064
        %1066 = vmatmul.bf16.gmra.mxu0 %v813
        %v1067 = vpop.f32.mrf.mxu0
        %v1068 = vadd.f32 %v714, %v1067
        %v1069 = vpop.f32.mrf.mxu0
        %v1070 = vadd.f32 %v716, %v1069
        %1071 = vmatmul.bf16.gmra.mxu0 %v814
        %v1072 = vpop.f32.mrf.mxu0
        %v1073 = vadd.f32 %v719, %v1072
        %v1074 = vpop.f32.mrf.mxu0
        %v1075 = vadd.f32 %v721, %v1074
        %1076 = vmatmul.bf16.gmra.mxu0 %v815
        %v1077 = vpop.f32.mrf.mxu0
        %v1078 = vadd.f32 %v724, %v1077
        %v1079 = vpop.f32.mrf.mxu0
        %v1080 = vadd.f32 %v726, %v1079
        %1081 = vmatmul.bf16.gmra.mxu0 %v816
        %v1082 = vpop.f32.mrf.mxu0
        %v1083 = vadd.f32 %v729, %v1082
        %v1084 = vpop.f32.mrf.mxu0
        %v1085 = vadd.f32 %v731, %v1084
        %1086 = vmatmul.bf16.gmra.mxu0 %v817
        %v1087 = vpop.f32.mrf.mxu0
        %v1088 = vadd.f32 %v734, %v1087
        %v1089 = vpop.f32.mrf.mxu0
        %v1090 = vadd.f32 %v736, %v1089
        %1091 = vdwg.mxu0
        %v1092 = vld [vmem:[%s4] sm:$0x3]
        %v1094 = vperm.slane %v1092, 0
        %v1095 = vperm.slane %v1092, 1
        %v1098 = vadd.f32 %v924, %v1094
        %v1099 = vadd.f32 %v1013, %v1095
        %v1100 = vadd.f32 %v926, %v1094
        %v1101 = vadd.f32 %v1015, %v1095
        %v1102 = vadd.f32 %v929, %v1094
        %v1103 = vadd.f32 %v1018, %v1095
        %v1104 = vadd.f32 %v931, %v1094
        %v1105 = vadd.f32 %v1020, %v1095
        %v1106 = vadd.f32 %v934, %v1094
        %v1107 = vadd.f32 %v1023, %v1095
        %v1108 = vadd.f32 %v936, %v1094
        %v1109 = vadd.f32 %v1025, %v1095
        %v1110 = vadd.f32 %v939, %v1094
        %v1111 = vadd.f32 %v1028, %v1095
        %v1112 = vadd.f32 %v941, %v1094
        %v1113 = vadd.f32 %v1030, %v1095
        %v1114 = vadd.f32 %v944, %v1094
        %v1115 = vadd.f32 %v1033, %v1095
        %v1116 = vadd.f32 %v946, %v1094
        %v1117 = vadd.f32 %v1035, %v1095
        %v1118 = vadd.f32 %v949, %v1094
        %v1119 = vadd.f32 %v1038, %v1095
        %v1120 = vadd.f32 %v951, %v1094
        %v1121 = vadd.f32 %v1040, %v1095
        %v1122 = vadd.f32 %v954, %v1094
        %v1123 = vadd.f32 %v1043, %v1095
        %v1124 = vadd.f32 %v956, %v1094
        %v1125 = vadd.f32 %v1045, %v1095
        %v1126 = vadd.f32 %v959, %v1094
        %v1127 = vadd.f32 %v1048, %v1095
        %v1128 = vadd.f32 %v961, %v1094
        %v1129 = vadd.f32 %v1050, %v1095
        %v1130 = vadd.f32 %v964, %v1094
        %v1131 = vadd.f32 %v1053, %v1095
        %v1132 = vadd.f32 %v966, %v1094
        %v1133 = vadd.f32 %v1055, %v1095
        %v1134 = vadd.f32 %v969, %v1094
        %v1135 = vadd.f32 %v1058, %v1095
        %v1136 = vadd.f32 %v971, %v1094
        %v1137 = vadd.f32 %v1060, %v1095
        %v1138 = vadd.f32 %v974, %v1094
        %v1139 = vadd.f32 %v1063, %v1095
        %v1140 = vadd.f32 %v976, %v1094
        %v1141 = vadd.f32 %v1065, %v1095
        %v1142 = vadd.f32 %v979, %v1094
        %v1143 = vadd.f32 %v1068, %v1095
        %v1144 = vadd.f32 %v981, %v1094
        %v1145 = vadd.f32 %v1070, %v1095
        %v1146 = vadd.f32 %v984, %v1094
        %v1147 = vadd.f32 %v1073, %v1095
        %v1148 = vadd.f32 %v986, %v1094
        %v1149 = vadd.f32 %v1075, %v1095
        %v1150 = vadd.f32 %v989, %v1094
        %v1151 = vadd.f32 %v1078, %v1095
        %v1152 = vadd.f32 %v991, %v1094
        %v1153 = vadd.f32 %v1080, %v1095
        %v1154 = vadd.f32 %v994, %v1094
        %v1155 = vadd.f32 %v1083, %v1095
        %v1156 = vadd.f32 %v996, %v1094
        %v1157 = vadd.f32 %v1085, %v1095
        %v1158 = vadd.f32 %v999, %v1094
        %v1159 = vadd.f32 %v1088, %v1095
        %v1160 = vadd.f32 %v1001, %v1094
        %v1161 = vadd.f32 %v1090, %v1095
        %v1162 = vmax.f32 %v1098, 0.0
        %v1163 = vmax.f32 %v1099, 0.0
        %v1164 = vmax.f32 %v1100, 0.0
        %v1165 = vmax.f32 %v1101, 0.0
        %v1166 = vmax.f32 %v1102, 0.0
        %v1167 = vmax.f32 %v1103, 0.0
        %v1168 = vmax.f32 %v1104, 0.0
        %v1169 = vmax.f32 %v1105, 0.0
        %v1170 = vmax.f32 %v1106, 0.0
        %v1171 = vmax.f32 %v1107, 0.0
        %v1172 = vmax.f32 %v1108, 0.0
        %v1173 = vmax.f32 %v1109, 0.0
        %v1174 = vmax.f32 %v1110, 0.0
        %v1175 = vmax.f32 %v1111, 0.0
        %v1176 = vmax.f32 %v1112, 0.0
        %v1177 = vmax.f32 %v1113, 0.0
        %v1178 = vmax.f32 %v1114, 0.0
        %v1179 = vmax.f32 %v1115, 0.0
        %v1180 = vmax.f32 %v1116, 0.0
        %v1181 = vmax.f32 %v1117, 0.0
        %v1182 = vmax.f32 %v1118, 0.0
        %v1183 = vmax.f32 %v1119, 0.0
        %v1184 = vmax.f32 %v1120, 0.0
        %v1185 = vmax.f32 %v1121, 0.0
        %v1186 = vmax.f32 %v1122, 0.0
        %v1187 = vmax.f32 %v1123, 0.0
        %v1188 = vmax.f32 %v1124, 0.0
        %v1189 = vmax.f32 %v1125, 0.0
        %v1190 = vmax.f32 %v1126, 0.0
        %v1191 = vmax.f32 %v1127, 0.0
        %v1192 = vmax.f32 %v1128, 0.0
        %v1193 = vmax.f32 %v1129, 0.0
        %v1194 = vmax.f32 %v1130, 0.0
        %v1195 = vmax.f32 %v1131, 0.0
        %v1196 = vmax.f32 %v1132, 0.0
        %v1197 = vmax.f32 %v1133, 0.0
        %v1198 = vmax.f32 %v1134, 0.0
        %v1199 = vmax.f32 %v1135, 0.0
        %v1200 = vmax.f32 %v1136, 0.0
        %v1201 = vmax.f32 %v1137, 0.0
        %v1202 = vmax.f32 %v1138, 0.0
        %v1203 = vmax.f32 %v1139, 0.0
        %v1204 = vmax.f32 %v1140, 0.0
        %v1205 = vmax.f32 %v1141, 0.0
        %v1206 = vmax.f32 %v1142, 0.0
        %v1207 = vmax.f32 %v1143, 0.0
        %v1208 = vmax.f32 %v1144, 0.0
        %v1209 = vmax.f32 %v1145, 0.0
        %v1210 = vmax.f32 %v1146, 0.0
        %v1211 = vmax.f32 %v1147, 0.0
        %v1212 = vmax.f32 %v1148, 0.0
        %v1213 = vmax.f32 %v1149, 0.0
        %v1214 = vmax.f32 %v1150, 0.0
        %v1215 = vmax.f32 %v1151, 0.0
        %v1216 = vmax.f32 %v1152, 0.0
        %v1217 = vmax.f32 %v1153, 0.0
        %v1218 = vmax.f32 %v1154, 0.0
        %v1219 = vmax.f32 %v1155, 0.0
        %v1220 = vmax.f32 %v1156, 0.0
        %v1221 = vmax.f32 %v1157, 0.0
        %v1222 = vmax.f32 %v1158, 0.0
        %v1223 = vmax.f32 %v1159, 0.0
        %v1224 = vmax.f32 %v1160, 0.0
        %v1225 = vmax.f32 %v1161, 0.0
        %v1226 = vpack.c.bf16 %v1164, %v1162
        %v1227 = vpack.c.bf16 %v1165, %v1163
        %v1228 = vpack.c.bf16 %v1168, %v1166
        %v1229 = vpack.c.bf16 %v1169, %v1167
        %v1230 = vpack.c.bf16 %v1172, %v1170
        %v1231 = vpack.c.bf16 %v1173, %v1171
        %v1232 = vpack.c.bf16 %v1176, %v1174
        %v1233 = vpack.c.bf16 %v1177, %v1175
        %v1234 = vpack.c.bf16 %v1180, %v1178
        %v1235 = vpack.c.bf16 %v1181, %v1179
        %v1236 = vpack.c.bf16 %v1184, %v1182
        %v1237 = vpack.c.bf16 %v1185, %v1183
        %v1238 = vpack.c.bf16 %v1188, %v1186
        %v1239 = vpack.c.bf16 %v1189, %v1187
        %v1240 = vpack.c.bf16 %v1192, %v1190
        %v1241 = vpack.c.bf16 %v1193, %v1191
        %v1242 = vpack.c.bf16 %v1196, %v1194
        %v1243 = vpack.c.bf16 %v1197, %v1195
        %v1244 = vpack.c.bf16 %v1200, %v1198
        %v1245 = vpack.c.bf16 %v1201, %v1199
        %v1246 = vpack.c.bf16 %v1204, %v1202
        %v1247 = vpack.c.bf16 %v1205, %v1203
        %v1248 = vpack.c.bf16 %v1208, %v1206
        %v1249 = vpack.c.bf16 %v1209, %v1207
        %v1250 = vpack.c.bf16 %v1212, %v1210
        %v1251 = vpack.c.bf16 %v1213, %v1211
        %v1252 = vpack.c.bf16 %v1216, %v1214
        %v1253 = vpack.c.bf16 %v1217, %v1215
        %v1254 = vpack.c.bf16 %v1220, %v1218
        %v1255 = vpack.c.bf16 %v1221, %v1219
        %v1256 = vpack.c.bf16 %v1224, %v1222
        %v1257 = vpack.c.bf16 %v1225, %v1223
        %v1258 = vld [vmem:[%s5] sm:$0xf]
        %v1259 = vld [vmem:[%s5 + $0x4] sm:$0xf]
        %v1260 = vld [vmem:[%s5 + $0x8] sm:$0xf]
        %v1261 = vld [vmem:[%s5 + $0xc] sm:$0xf]
        %v1262 = vld [vmem:[%s5 + $0x10] sm:$0xf]
        %v1263 = vld [vmem:[%s5 + $0x14] sm:$0xf]
        %v1264 = vld [vmem:[%s5 + $0x18] sm:$0xf]
        %v1265 = vld [vmem:[%s5 + $0x1c] sm:$0xf]
        %v1266 = vld [vmem:[%s5 + $0x20] sm:$0xf]
        %v1267 = vld [vmem:[%s5 + $0x24] sm:$0xf]
        %v1268 = vld [vmem:[%s5 + $0x28] sm:$0xf]
        %v1269 = vld [vmem:[%s5 + $0x2c] sm:$0xf]
        %v1270 = vld [vmem:[%s5 + $0x30] sm:$0xf]
        %v1271 = vld [vmem:[%s5 + $0x34] sm:$0xf]
        %v1272 = vld [vmem:[%s5 + $0x38] sm:$0xf]
        %v1273 = vld [vmem:[%s5 + $0x3c] sm:$0xf]
        %v1274 = vld [vmem:[%s5 + $0x40] sm:$0xf]
        %v1275 = vld [vmem:[%s5 + $0x44] sm:$0xf]
        %v1276 = vld [vmem:[%s5 + $0x48] sm:$0xf]
        %v1277 = vld [vmem:[%s5 + $0x4c] sm:$0xf]
        %v1278 = vld [vmem:[%s5 + $0x50] sm:$0xf]
        %v1279 = vld [vmem:[%s5 + $0x54] sm:$0xf]
        %v1280 = vld [vmem:[%s5 + $0x58] sm:$0xf]
        %v1281 = vld [vmem:[%s5 + $0x5c] sm:$0xf]
        %v1282 = vld [vmem:[%s5 + $0x60] sm:$0xf]
        %v1283 = vld [vmem:[%s5 + $0x64] sm:$0xf]
        %v1284 = vld [vmem:[%s5 + $0x68] sm:$0xf]
        %v1285 = vld [vmem:[%s5 + $0x6c] sm:$0xf]
        %v1286 = vld [vmem:[%s5 + $0x70] sm:$0xf]
        %v1287 = vld [vmem:[%s5 + $0x74] sm:$0xf]
        %v1288 = vld [vmem:[%s5 + $0x78] sm:$0xf]
        %v1289 = vld [vmem:[%s5 + $0x7c] sm:$0xf]
        %v1290 = vld [vmem:[%s6] sm:$0x1]
        %v1292 = vperm.slane %v1290, 0
        %v1326 = vunpack.c.l.b16 %v1258
        %v1327 = vunpack.c.l.b16 %v1259
        %v1328 = vunpack.c.l.b16 %v1260
        %v1329 = vunpack.c.l.b16 %v1261
        %v1330 = vunpack.c.l.b16 %v1262
        %v1331 = vunpack.c.l.b16 %v1263
        %v1332 = vunpack.c.l.b16 %v1264
        %v1333 = vunpack.c.l.b16 %v1265
        %v1334 = vunpack.c.l.b16 %v1266
        %v1335 = vunpack.c.l.b16 %v1267
        %v1336 = vunpack.c.l.b16 %v1268
        %v1337 = vunpack.c.l.b16 %v1269
        %v1338 = vunpack.c.l.b16 %v1270
        %v1339 = vunpack.c.l.b16 %v1271
        %v1340 = vunpack.c.l.b16 %v1272
        %v1341 = vunpack.c.l.b16 %v1273
        %v1342 = vunpack.c.l.b16 %v1274
        %v1343 = vunpack.c.l.b16 %v1275
        %v1344 = vunpack.c.l.b16 %v1276
        %v1345 = vunpack.c.l.b16 %v1277
        %v1346 = vunpack.c.l.b16 %v1278
        %v1347 = vunpack.c.l.b16 %v1279
        %v1348 = vunpack.c.l.b16 %v1280
        %v1349 = vunpack.c.l.b16 %v1281
        %v1350 = vunpack.c.l.b16 %v1282
        %v1351 = vunpack.c.l.b16 %v1283
        %v1352 = vunpack.c.l.b16 %v1284
        %v1353 = vunpack.c.l.b16 %v1285
        %v1354 = vunpack.c.l.b16 %v1286
        %v1355 = vunpack.c.l.b16 %v1287
        %v1356 = vunpack.c.l.b16 %v1288
        %v1357 = vunpack.c.l.b16 %v1289
        %v1358 = vpack.c.b16 %v1327, %v1326
        %v1359 = vpack.c.b16 %v1329, %v1328
        %v1360 = vpack.c.b16 %v1331, %v1330
        %v1361 = vpack.c.b16 %v1333, %v1332
        %v1362 = vpack.c.b16 %v1335, %v1334
        %v1363 = vpack.c.b16 %v1337, %v1336
        %v1364 = vpack.c.b16 %v1339, %v1338
        %v1365 = vpack.c.b16 %v1341, %v1340
        %v1366 = vpack.c.b16 %v1343, %v1342
        %v1367 = vpack.c.b16 %v1345, %v1344
        %v1368 = vpack.c.b16 %v1347, %v1346
        %v1369 = vpack.c.b16 %v1349, %v1348
        %v1370 = vpack.c.b16 %v1351, %v1350
        %v1371 = vpack.c.b16 %v1353, %v1352
        %v1372 = vpack.c.b16 %v1355, %v1354
        %v1373 = vpack.c.b16 %v1357, %v1356
        %1390 = vmatpush.bf16.msra.mxu0 %v1365
        %1391 = vmatpush.bf16.msra.mxu0 %v1364
        %1392 = vmatpush.bf16.msra.mxu0 %v1363
        %1393 = vmatpush.bf16.msra.mxu0 %v1362
        %1394 = vmatpush.bf16.msra.mxu0 %v1361
        %1395 = vmatpush.bf16.msra.mxu0 %v1360
        %1396 = vmatpush.bf16.msra.mxu0 %v1359
        %1397 = vmatpush.bf16.msra.mxu0 %v1358
        %1398 = vmatmul.bf16.gmra.mxu0 %v1226
        %v1399 = vpop.f32.mrf.mxu0
        %v1400 = vadd.f32 %v1292, %v1399
        %v1401 = vpop.f32.mrf.mxu0
        %v1402 = vadd.f32 %v1292, %v1401
        %1403 = vmatmul.bf16.gmra.mxu0 %v1228
        %v1404 = vpop.f32.mrf.mxu0
        %v1405 = vadd.f32 %v1292, %v1404
        %v1406 = vpop.f32.mrf.mxu0
        %v1407 = vadd.f32 %v1292, %v1406
        %1408 = vmatmul.bf16.gmra.mxu0 %v1230
        %v1409 = vpop.f32.mrf.mxu0
        %v1410 = vadd.f32 %v1292, %v1409
        %v1411 = vpop.f32.mrf.mxu0
        %v1412 = vadd.f32 %v1292, %v1411
        %1413 = vmatmul.bf16.gmra.mxu0 %v1232
        %v1414 = vpop.f32.mrf.mxu0
        %v1415 = vadd.f32 %v1292, %v1414
        %v1416 = vpop.f32.mrf.mxu0
        %v1417 = vadd.f32 %v1292, %v1416
        %1418 = vmatmul.bf16.gmra.mxu0 %v1234
        %v1419 = vpop.f32.mrf.mxu0
        %v1420 = vadd.f32 %v1292, %v1419
        %v1421 = vpop.f32.mrf.mxu0
        %v1422 = vadd.f32 %v1292, %v1421
        %1423 = vmatmul.bf16.gmra.mxu0 %v1236
        %v1424 = vpop.f32.mrf.mxu0
        %v1425 = vadd.f32 %v1292, %v1424
        %v1426 = vpop.f32.mrf.mxu0
        %v1427 = vadd.f32 %v1292, %v1426
        %1428 = vmatmul.bf16.gmra.mxu0 %v1238
        %v1429 = vpop.f32.mrf.mxu0
        %v1430 = vadd.f32 %v1292, %v1429
        %v1431 = vpop.f32.mrf.mxu0
        %v1432 = vadd.f32 %v1292, %v1431
        %1433 = vmatmul.bf16.gmra.mxu0 %v1240
        %v1434 = vpop.f32.mrf.mxu0
        %v1435 = vadd.f32 %v1292, %v1434
        %v1436 = vpop.f32.mrf.mxu0
        %v1437 = vadd.f32 %v1292, %v1436
        %1438 = vmatmul.bf16.gmra.mxu0 %v1242
        %v1439 = vpop.f32.mrf.mxu0
        %v1440 = vadd.f32 %v1292, %v1439
        %v1441 = vpop.f32.mrf.mxu0
        %v1442 = vadd.f32 %v1292, %v1441
        %1443 = vmatmul.bf16.gmra.mxu0 %v1244
        %v1444 = vpop.f32.mrf.mxu0
        %v1445 = vadd.f32 %v1292, %v1444
        %v1446 = vpop.f32.mrf.mxu0
        %v1447 = vadd.f32 %v1292, %v1446
        %1448 = vmatmul.bf16.gmra.mxu0 %v1246
        %v1449 = vpop.f32.mrf.mxu0
        %v1450 = vadd.f32 %v1292, %v1449
        %v1451 = vpop.f32.mrf.mxu0
        %v1452 = vadd.f32 %v1292, %v1451
        %1453 = vmatmul.bf16.gmra.mxu0 %v1248
        %v1454 = vpop.f32.mrf.mxu0
        %v1455 = vadd.f32 %v1292, %v1454
        %v1456 = vpop.f32.mrf.mxu0
        %v1457 = vadd.f32 %v1292, %v1456
        %1458 = vmatmul.bf16.gmra.mxu0 %v1250
        %v1459 = vpop.f32.mrf.mxu0
        %v1460 = vadd.f32 %v1292, %v1459
        %v1461 = vpop.f32.mrf.mxu0
        %v1462 = vadd.f32 %v1292, %v1461
        %1463 = vmatmul.bf16.gmra.mxu0 %v1252
        %v1464 = vpop.f32.mrf.mxu0
        %v1465 = vadd.f32 %v1292, %v1464
        %v1466 = vpop.f32.mrf.mxu0
        %v1467 = vadd.f32 %v1292, %v1466
        %1468 = vmatmul.bf16.gmra.mxu0 %v1254
        %v1469 = vpop.f32.mrf.mxu0
        %v1470 = vadd.f32 %v1292, %v1469
        %v1471 = vpop.f32.mrf.mxu0
        %v1472 = vadd.f32 %v1292, %v1471
        %1473 = vmatmul.bf16.gmra.mxu0 %v1256
        %v1474 = vpop.f32.mrf.mxu0
        %v1475 = vadd.f32 %v1292, %v1474
        %v1476 = vpop.f32.mrf.mxu0
        %v1477 = vadd.f32 %v1292, %v1476
        %1478 = vdwg.mxu0
        %1479 = vmatpush.bf16.msra.mxu0 %v1373
        %1480 = vmatpush.bf16.msra.mxu0 %v1372
        %1481 = vmatpush.bf16.msra.mxu0 %v1371
        %1482 = vmatpush.bf16.msra.mxu0 %v1370
        %1483 = vmatpush.bf16.msra.mxu0 %v1369
        %1484 = vmatpush.bf16.msra.mxu0 %v1368
        %1485 = vmatpush.bf16.msra.mxu0 %v1367
        %1486 = vmatpush.bf16.msra.mxu0 %v1366
        %1487 = vmatmul.bf16.gmra.mxu0 %v1227
        %v1488 = vpop.f32.mrf.mxu0
        %v1489 = vadd.f32 %v1400, %v1488
        %v1490 = vpop.f32.mrf.mxu0
        %v1491 = vadd.f32 %v1402, %v1490
        %1492 = vmatmul.bf16.gmra.mxu0 %v1229
        %v1493 = vpop.f32.mrf.mxu0
        %v1494 = vadd.f32 %v1405, %v1493
        %v1495 = vpop.f32.mrf.mxu0
        %v1496 = vadd.f32 %v1407, %v1495
        %1497 = vmatmul.bf16.gmra.mxu0 %v1231
        %v1498 = vpop.f32.mrf.mxu0
        %v1499 = vadd.f32 %v1410, %v1498
        %v1500 = vpop.f32.mrf.mxu0
        %v1501 = vadd.f32 %v1412, %v1500
        %1502 = vmatmul.bf16.gmra.mxu0 %v1233
        %v1503 = vpop.f32.mrf.mxu0
        %v1504 = vadd.f32 %v1415, %v1503
        %v1505 = vpop.f32.mrf.mxu0
        %v1506 = vadd.f32 %v1417, %v1505
        %1507 = vmatmul.bf16.gmra.mxu0 %v1235
        %v1508 = vpop.f32.mrf.mxu0
        %v1509 = vadd.f32 %v1420, %v1508
        %v1510 = vpop.f32.mrf.mxu0
        %v1511 = vadd.f32 %v1422, %v1510
        %1512 = vmatmul.bf16.gmra.mxu0 %v1237
        %v1513 = vpop.f32.mrf.mxu0
        %v1514 = vadd.f32 %v1425, %v1513
        %v1515 = vpop.f32.mrf.mxu0
        %v1516 = vadd.f32 %v1427, %v1515
        %1517 = vmatmul.bf16.gmra.mxu0 %v1239
        %v1518 = vpop.f32.mrf.mxu0
        %v1519 = vadd.f32 %v1430, %v1518
        %v1520 = vpop.f32.mrf.mxu0
        %v1521 = vadd.f32 %v1432, %v1520
        %1522 = vmatmul.bf16.gmra.mxu0 %v1241
        %v1523 = vpop.f32.mrf.mxu0
        %v1524 = vadd.f32 %v1435, %v1523
        %v1525 = vpop.f32.mrf.mxu0
        %v1526 = vadd.f32 %v1437, %v1525
        %1527 = vmatmul.bf16.gmra.mxu0 %v1243
        %v1528 = vpop.f32.mrf.mxu0
        %v1529 = vadd.f32 %v1440, %v1528
        %v1530 = vpop.f32.mrf.mxu0
        %v1531 = vadd.f32 %v1442, %v1530
        %1532 = vmatmul.bf16.gmra.mxu0 %v1245
        %v1533 = vpop.f32.mrf.mxu0
        %v1534 = vadd.f32 %v1445, %v1533
        %v1535 = vpop.f32.mrf.mxu0
        %v1536 = vadd.f32 %v1447, %v1535
        %1537 = vmatmul.bf16.gmra.mxu0 %v1247
        %v1538 = vpop.f32.mrf.mxu0
        %v1539 = vadd.f32 %v1450, %v1538
        %v1540 = vpop.f32.mrf.mxu0
        %v1541 = vadd.f32 %v1452, %v1540
        %1542 = vmatmul.bf16.gmra.mxu0 %v1249
        %v1543 = vpop.f32.mrf.mxu0
        %v1544 = vadd.f32 %v1455, %v1543
        %v1545 = vpop.f32.mrf.mxu0
        %v1546 = vadd.f32 %v1457, %v1545
        %1547 = vmatmul.bf16.gmra.mxu0 %v1251
        %v1548 = vpop.f32.mrf.mxu0
        %v1549 = vadd.f32 %v1460, %v1548
        %v1550 = vpop.f32.mrf.mxu0
        %v1551 = vadd.f32 %v1462, %v1550
        %1552 = vmatmul.bf16.gmra.mxu0 %v1253
        %v1553 = vpop.f32.mrf.mxu0
        %v1554 = vadd.f32 %v1465, %v1553
        %v1555 = vpop.f32.mrf.mxu0
        %v1556 = vadd.f32 %v1467, %v1555
        %1557 = vmatmul.bf16.gmra.mxu0 %v1255
        %v1558 = vpop.f32.mrf.mxu0
        %v1559 = vadd.f32 %v1470, %v1558
        %v1560 = vpop.f32.mrf.mxu0
        %v1561 = vadd.f32 %v1472, %v1560
        %1562 = vmatmul.bf16.gmra.mxu0 %v1257
        %v1563 = vpop.f32.mrf.mxu0
        %v1564 = vadd.f32 %v1475, %v1563
        %v1565 = vpop.f32.mrf.mxu0
        %v1566 = vadd.f32 %v1477, %v1565
        %1567 = vdwg.mxu0
        %v1568 = vmax.f32 %v1489, 0.0
        %v1569 = vmax.f32 %v1491, 0.0
        %v1570 = vmax.f32 %v1494, 0.0
        %v1571 = vmax.f32 %v1496, 0.0
        %v1572 = vmax.f32 %v1499, 0.0
        %v1573 = vmax.f32 %v1501, 0.0
        %v1574 = vmax.f32 %v1504, 0.0
        %v1575 = vmax.f32 %v1506, 0.0
        %v1576 = vmax.f32 %v1509, 0.0
        %v1577 = vmax.f32 %v1511, 0.0
        %v1578 = vmax.f32 %v1514, 0.0
        %v1579 = vmax.f32 %v1516, 0.0
        %v1580 = vmax.f32 %v1519, 0.0
        %v1581 = vmax.f32 %v1521, 0.0
        %v1582 = vmax.f32 %v1524, 0.0
        %v1583 = vmax.f32 %v1526, 0.0
        %v1584 = vmax.f32 %v1529, 0.0
        %v1585 = vmax.f32 %v1531, 0.0
        %v1586 = vmax.f32 %v1534, 0.0
        %v1587 = vmax.f32 %v1536, 0.0
        %v1588 = vmax.f32 %v1539, 0.0
        %v1589 = vmax.f32 %v1541, 0.0
        %v1590 = vmax.f32 %v1544, 0.0
        %v1591 = vmax.f32 %v1546, 0.0
        %v1592 = vmax.f32 %v1549, 0.0
        %v1593 = vmax.f32 %v1551, 0.0
        %v1594 = vmax.f32 %v1554, 0.0
        %v1595 = vmax.f32 %v1556, 0.0
        %v1596 = vmax.f32 %v1559, 0.0
        %v1597 = vmax.f32 %v1561, 0.0
        %v1598 = vmax.f32 %v1564, 0.0
        %v1599 = vmax.f32 %v1566, 0.0
        %1600 = vst [vmem:[%s288] sm:$0xff] %v1568
        %1601 = vst [vmem:[%s288 + $0x8] sm:$0xff] %v1569
        %1602 = vst [vmem:[%s288 + $0x10] sm:$0xff] %v1570
        %1603 = vst [vmem:[%s288 + $0x18] sm:$0xff] %v1571
        %1604 = vst [vmem:[%s288 + $0x20] sm:$0xff] %v1572
        %1605 = vst [vmem:[%s288 + $0x28] sm:$0xff] %v1573
        %1606 = vst [vmem:[%s288 + $0x30] sm:$0xff] %v1574
        %1607 = vst [vmem:[%s288 + $0x38] sm:$0xff] %v1575
        %1608 = vst [vmem:[%s288 + $0x40] sm:$0xff] %v1576
        %1609 = vst [vmem:[%s288 + $0x48] sm:$0xff] %v1577
        %1610 = vst [vmem:[%s288 + $0x50] sm:$0xff] %v1578
        %1611 = vst [vmem:[%s288 + $0x58] sm:$0xff] %v1579
        %1612 = vst [vmem:[%s288 + $0x60] sm:$0xff] %v1580
        %1613 = vst [vmem:[%s288 + $0x68] sm:$0xff] %v1581
        %1614 = vst [vmem:[%s288 + $0x70] sm:$0xff] %v1582
        %1615 = vst [vmem:[%s288 + $0x78] sm:$0xff] %v1583
        %1616 = vst [vmem:[%s288 + $0x80] sm:$0xff] %v1584
        %1617 = vst [vmem:[%s288 + $0x88] sm:$0xff] %v1585
        %1618 = vst [vmem:[%s288 + $0x90] sm:$0xff] %v1586
        %1619 = vst [vmem:[%s288 + $0x98] sm:$0xff] %v1587
        %1620 = vst [vmem:[%s288 + $0xa0] sm:$0xff] %v1588
        %1621 = vst [vmem:[%s288 + $0xa8] sm:$0xff] %v1589
        %1622 = vst [vmem:[%s288 + $0xb0] sm:$0xff] %v1590
        %1623 = vst [vmem:[%s288 + $0xb8] sm:$0xff] %v1591
        %1624 = vst [vmem:[%s288 + $0xc0] sm:$0xff] %v1592
        %1625 = vst [vmem:[%s288 + $0xc8] sm:$0xff] %v1593
        %1626 = vst [vmem:[%s288 + $0xd0] sm:$0xff] %v1594
        %1627 = vst [vmem:[%s288 + $0xd8] sm:$0xff] %v1595
        %1628 = vst [vmem:[%s288 + $0xe0] sm:$0xff] %v1596
        %1629 = vst [vmem:[%s288 + $0xe8] sm:$0xff] %v1597
        %1630 = vst [vmem:[%s288 + $0xf0] sm:$0xff] %v1598
        %1631 = vst [vmem:[%s288 + $0xf8] sm:$0xff] %v1599
        %s1632 = sand.u32 %s186, 1
        %s1633 = scalar_lea.sflag [#allocation3], %s1632
        %s1634 = sand.u32 %s186, 1
        %s1635 = smul.addr %s1634, 256
        %s1636 = scalar_lea.vmem [#allocation2], %s1635
        // Predicated region
        $region49: #{fp_forward.1} parent=47 // pred_check
          %p1637 = pneg %p196
        $region50: #{fp_forward.1} parent=47 // pred_check_branch
          %1639 = sbr.rel (%p1637) target = $region52
        $region51: #{fp_forward.1} parent=47 // pred_region
          %s1640 = smul.u32 32, %s21
          %1642 = vsyncadd %s1633, 0
          %s1643 = smul.addr %s1640, 8
          %s1644 = scalar_lea.hbm %s7, %s1643
          %s1645 = sshll.u32 %s1636, 4
          %s1646 = int_to_ptr.vmem [resolvable:$true] %s1645
          %s1647 = sshll.u32 %s1644, 4
          %s1648 = int_to_ptr.hbm [resolvable:$true] %s1647
          %1653 = dma.vmem_to_hbm [thread:$0]  %s1646, 4096, %s1648, %s1633, 128, 128, 8
        $region52: #{fp_forward.1} parent=47 // pred_fallthru
          _
      $region48: #{fp_forward.1} parent=5 // pred_fallthru
        _
      %p1654 = scmp.le.s32.totalorder 2, %s16
      // Predicated region
      $region53: #{fp_forward.1} parent=5 // pred_check
        %p1655 = pneg %p1654
      $region54: #{fp_forward.1} parent=5 // pred_check_branch
        %1657 = sbr.rel (%p1655) target = $region56
      $region55: #{fp_forward.1} parent=5 // pred_region
        %s1658 = ssub.s32 %s16, 2
        // Predicated region
        $region57: #{fp_forward.1} parent=55 // pred_check
          %p1659 = pneg %p202
        $region58: #{fp_forward.1} parent=55 // pred_check_branch
          %1661 = sbr.rel (%p1659) target = $region60
        $region59: #{fp_forward.1} parent=55 // pred_region
          %s1662 = sand.u32 %s187, 1
          %s1663 = scalar_lea.sflag [#allocation3], %s1662
          %s1664 = sand.u32 %s187, 1
          %s1665 = smul.addr %s1664, 256
          %s1666 = scalar_lea.vmem [#allocation2], %s1665
          %1668 = dma.done %s1663, 4096
        $region60: #{fp_forward.1} parent=55 // pred_fallthru
          _
      $region56: #{fp_forward.1} parent=5 // pred_fallthru
        _
    $region6: #{fp_forward.1} parent=1 // loop_footer
      %s20 = sadd.s32 1, %s16
    $region7: #{fp_forward.1} parent=1 // loop_footer_branch
      %15 = sbr.rel target = $region3
    $region8: #{fp_forward.1} parent=1 // loop_exit
      _
    %1669 = vsyncpa [#allocation3], 1
    %s1670 = scalar_lea.sflag [#allocation3], 1
    %1671 = vsyncpa %s1670, 1

</llo_original>
